<compile_context>
chip_gen: v7x
topology: tpu7x:2x2x1
jax: 0.10.0
libtpu: 0.0.40
codegen_flags: <defaults>
</compile_context>

<pallas_src>
import functools
import math

import jax
import jax.numpy as jnp
from jax.experimental import pallas as pl
from jax.experimental.pallas import tpu as pltpu


# ------------------------------- kernel helpers -------------------------------

def _layer_norm(y, g, b, eps):
    # Single-pass LN: E[x] and E[x^2] in one pass; var = E[x^2] - E[x]^2.
    mu = jnp.mean(y, axis=-1, keepdims=True)
    mu2 = jnp.mean(y * y, axis=-1, keepdims=True)
    var = jnp.maximum(mu2 - mu * mu, 0.0)
    r = jax.lax.rsqrt(var + eps)
    return (y - mu) * (r * g) + b


# Rows of the packed per-layer vector slab.
_BQ, _BK, _BV, _BO, _LN1G, _LN1B, _B1, _B2, _LN2G, _LN2B = range(10)


# ---------------------------------- kernel ------------------------------------

def _encoder_kernel(x_ref, pe_ref, wq_ref, wk_ref, wv_ref, wo_ref,
                    w1_ref, w2_ref, vec_ref, lnf_ref, *rest,
                    n_head, d_k, d_model, d_inner, use_mask, resident):
    """Grid = (batch, layer).  One batch element per program; the layer axis is
    sequential and carries the activations in the `xbuf` VMEM scratch.  When
    `resident` is True all weights live in VMEM for the whole call and are
    indexed with the dynamic layer id; otherwise they are streamed per layer."""
    if use_mask:
        mask_ref, out_ref, xbuf = rest
    else:
        out_ref, xbuf = rest
        mask_ref = None

    layer = pl.program_id(1)
    n_layers = pl.num_programs(1)
    L = xbuf.shape[0]

    # Select this layer's slab: dynamic first-axis index when resident,
    # index 0 when the pipeline already streamed the right layer block.
    sel = (lambda r: r[layer]) if resident else (lambda r: r[0])

    # First layer for this batch element: load activations + positional encoding.
    @pl.when(layer == 0)
    def _():
        xbuf[...] = x_ref[0].astype(jnp.float32) + pe_ref[...]

    x = xbuf[...]                                   # (L, D) f32 running activations

    vecs = sel(vec_ref)                             # (10, W) f32 packed per-layer vectors
    bq = vecs[_BQ:_BQ + 1, :d_model]                # note: 1/sqrt(d_k) pre-folded
    bk = vecs[_BK:_BK + 1, :d_model]
    bv = vecs[_BV:_BV + 1, :d_model]
    bo = vecs[_BO:_BO + 1, :d_model]
    g1 = vecs[_LN1G:_LN1G + 1, :d_model]
    be1 = vecs[_LN1B:_LN1B + 1, :d_model]
    b1 = vecs[_B1:_B1 + 1, :d_inner]
    b2 = vecs[_B2:_B2 + 1, :d_model]
    g2 = vecs[_LN2G:_LN2G + 1, :d_model]
    be2 = vecs[_LN2B:_LN2B + 1, :d_model]

    # ---------------- multi-head self-attention (head-batched) ----------------
    xb = x.astype(jnp.bfloat16)                     # bf16 MXU operands, f32 accumulation
    q = jnp.dot(xb, sel(wq_ref), preferred_element_type=jnp.float32) + bq
    k = jnp.dot(xb, sel(wk_ref), preferred_element_type=jnp.float32) + bk
    v = jnp.dot(xb, sel(wv_ref), preferred_element_type=jnp.float32) + bv

    qh = pltpu.einshape("lhd->hld", q.astype(jnp.bfloat16).reshape(L, n_head, d_k))
    kh = pltpu.einshape("lhd->hld", k.astype(jnp.bfloat16).reshape(L, n_head, d_k))
    vh = pltpu.einshape("lhd->hld", v.astype(jnp.bfloat16).reshape(L, n_head, d_k))

    s = jnp.einsum("hld,hmd->hlm", qh, kh,
                   preferred_element_type=jnp.float32)          # (H, L, L)
    if use_mask:
        masked = (mask_ref[0] != 0)[None]                       # (1, L, L) bool
        s = jnp.where(masked, jnp.float32(-1e30), s)
    m = jnp.max(s, axis=-1, keepdims=True)
    # TODO(synk): on v6e/v7x the exponent can run in bf16 (bf16 EUP) for ~2x
    # exp throughput; kept f32 here so the same kernel is exact-ish on v5e.
    e = jnp.exp(s - m)                                          # (H, L, L) f32
    denom = jnp.sum(e, axis=-1, keepdims=True)                  # (H, L, 1) f32
    ctx_h = jnp.einsum("hlm,hmd->hld", e.astype(jnp.bfloat16), vh,
                       preferred_element_type=jnp.float32)      # (H, L, d_k)
    ctx_h = ctx_h * pl.reciprocal(denom, approx=True)           # normalize context, not probs
    ctx = pltpu.einshape("hld->lhd", ctx_h.astype(jnp.bfloat16)).reshape(L, d_model)

    # Fused output projection: ONE (L,D)@(D,D) matmul (full K = D contraction).
    o = jnp.dot(ctx, sel(wo_ref), preferred_element_type=jnp.float32) + bo
    x = _layer_norm(o + x, g1, be1, 1e-5)

    # ---- position-wise FFN (Conv1d(k=1) over length == per-position Linear) ----
    h1 = jnp.dot(x.astype(jnp.bfloat16), sel(w1_ref),
                 preferred_element_type=jnp.float32) + b1
    h1 = jnp.maximum(h1, 0.0)                                   # ReLU
    f = jnp.dot(h1.astype(jnp.bfloat16), sel(w2_ref),
                preferred_element_type=jnp.float32) + b2
    x = _layer_norm(f + x, g2, be2, 1e-5)

    # Carry activations to the next layer (dead on the last layer -> skip store).
    @pl.when(layer != n_layers - 1)
    def _():
        xbuf[...] = x

    # Last layer: final LayerNorm(eps=1e-6) and write the output slab once.
    @pl.when(layer == n_layers - 1)
    def _():
        out_ref[0] = _layer_norm(x, lnf_ref[0:1, :], lnf_ref[1:2, :],
                                 1e-6).astype(out_ref.dtype)


# ------------------------------ host wrapper ----------------------------------

def transformer_encoder(x, params, src_mask=None, *, n_layers, n_head):
    """x: (B, L, D) float32.  src_mask: optional bool (B, L, L), True = masked."""
    B, L, D = x.shape
    assert D % n_head == 0
    d_k = D // n_head
    d_inner = params['w1'].shape[-1]
    use_mask = src_mask is not None
    inv_temp = 1.0 / float(d_k) ** 0.5

    pe = params['pe'][:L]

    # Fold 1/sqrt(d_k) into wq / bq (constants); kernel never scales scores/q.
    wq = (params['wq'].astype(jnp.float32) * inv_temp).astype(jnp.bfloat16)
    wk, wv, wo = params['wk'], params['wv'], params['wo']
    w1, w2 = params['w1'], params['w2']

    # Pack all small per-layer vectors into one (n_layers, 10, W) f32 slab.
    W = max(D, d_inner)

    def row(a, scale=None):
        a = a.astype(jnp.float32)
        if scale is not None:
            a = a * scale
        if a.shape[-1] < W:
            a = jnp.pad(a, ((0, 0), (0, 0), (0, W - a.shape[-1])))
        return a

    vecs = jnp.concatenate([
        row(params['bq'], inv_temp), row(params['bk']), row(params['bv']),
        row(params['bo']), row(params['ln1_g']), row(params['ln1_b']),
        row(params['b1']), row(params['b2']),
        row(params['ln2_g']), row(params['ln2_b']),
    ], axis=1)                                                   # (n_layers, 10, W)

    lnf = jnp.concatenate([params['lnf_g'], params['lnf_b']], axis=0)  # (2, D)

    # ------------- generation-aware VMEM budget & weight residency -------------
    vmem_cap = 64 * 1024 * 1024
    try:  # trace-time hardware query; fall back to a conservative 64 MiB.
        vmem_cap = int(pltpu.get_tpu_info().vmem_capacity_bytes)
    except Exception:
        pass
    budget = (3 * vmem_cap) // 4          # ~48 MiB on v7x, ~96 MiB on v5e/v6e

    weight_arrays = [wq, wk, wv, wo, w1, w2, vecs]
    weight_bytes = sum(int(a.size) * a.dtype.itemsize for a in weight_arrays)
    per_layer_weight_bytes = weight_bytes // max(n_layers, 1)
    act_bytes = 4 * (16 * L * D + 4 * L * d_inner + 4 * n_head * L * L)
    if use_mask:
        act_bytes += 2 * L * L            # int8 mask block, double-buffered
    resident = weight_bytes + act_bytes + (4 << 20) <= budget
    needed = (weight_bytes if resident else 2 * per_layer_weight_bytes) \
        + act_bytes + (8 << 20)
    vmem_limit = int(min(budget, max(needed, 32 << 20)))

    if resident:
        # Constant-index full-array blocks: each weight DMA'd once per call.
        def w_spec(a):
            nd = a.ndim
            return pl.BlockSpec(a.shape, lambda b, l, _nd=nd: (0,) * _nd)
    else:
        # Streamed per-layer blocks (double-buffered by the pipeline).
        def w_spec(a):
            tail = a.shape[1:]
            nz = (0,) * len(tail)
            return pl.BlockSpec((1,) + tail, lambda b, l, _nz=nz: (l,) + _nz)

    in_specs = [
        pl.BlockSpec((1, L, D), lambda b, l: (b, 0, 0)),         # x (once per b)
        pl.BlockSpec((L, D), lambda b, l: (0, 0)),               # positional encoding
        w_spec(wq), w_spec(wk), w_spec(wv), w_spec(wo),
        w_spec(w1), w_spec(w2), w_spec(vecs),
        pl.BlockSpec((2, D), lambda b, l: (0, 0)),               # final LN gamma/beta
    ]
    inputs = [x, pe, wq, wk, wv, wo, w1, w2, vecs, lnf]
    if use_mask:
        inputs.append(src_mask.astype(jnp.int8))                 # 4x lighter than f32 bias
        in_specs.append(pl.BlockSpec((1, L, L), lambda b, l: (b, 0, 0)))

    kernel = functools.partial(
        _encoder_kernel, n_head=n_head, d_k=d_k, d_model=D, d_inner=d_inner,
        use_mask=use_mask, resident=resident)

    return pl.pallas_call(
        kernel,
        out_shape=jax.ShapeDtypeStruct((B, L, D), jnp.float32),
        grid_spec=pltpu.PrefetchScalarGridSpec(
            num_scalar_prefetch=0,
            grid=(B, n_layers),
            in_specs=in_specs,
            out_specs=pl.BlockSpec((1, L, D), lambda b, l: (b, 0, 0)),
            scratch_shapes=[pltpu.VMEM((L, D), jnp.float32)],
        ),
        compiler_params=pltpu.CompilerParams(
            # batch -> megacore; layer axis carries the VMEM activation scratch.
            dimension_semantics=("parallel", "arbitrary"),
            vmem_limit_bytes=vmem_limit,
        ),
    )(*inputs)


# --------------------------- parameters (synthetic) ----------------------------

def sinusoidal_pe(max_len, dim):
    position = jnp.arange(max_len, dtype=jnp.float32)[:, None]
    div_term = jnp.exp(jnp.arange(0, dim, 2, dtype=jnp.float32)
                       * -(math.log(10000.0) / dim))
    ang = position * div_term[None, :]
    pe = jnp.zeros((max_len, dim), jnp.float32)
    pe = pe.at[:, 0::2].set(jnp.sin(ang))
    pe = pe.at[:, 1::2].set(jnp.cos(ang))
    return pe


def init_params(key, n_layers, n_head, d_model, d_inner, n_position):
    ks = jax.random.split(key, 10)

    def w(k, shape, scale=0.05):          # MXU weights stored in bf16
        return (scale * jax.random.normal(k, shape)).astype(jnp.bfloat16)

    def bvec(k, shape, scale=0.05):       # biases / LN params stay f32
        return (scale * jax.random.normal(k, shape)).astype(jnp.float32)

    return dict(
        pe=sinusoidal_pe(n_position, d_model),
        wq=w(ks[0], (n_layers, d_model, d_model)),
        bq=bvec(ks[1], (n_layers, 1, d_model)),
        wk=w(ks[2], (n_layers, d_model, d_model)),
        bk=bvec(ks[3], (n_layers, 1, d_model)),
        wv=w(ks[4], (n_layers, d_model, d_model)),
        bv=bvec(ks[5], (n_layers, 1, d_model)),
        wo=w(ks[6], (n_layers, d_model, d_model)),
        bo=bvec(ks[7], (n_layers, 1, d_model)),
        ln1_g=jnp.ones((n_layers, 1, d_model), jnp.float32),
        ln1_b=jnp.zeros((n_layers, 1, d_model), jnp.float32),
        w1=w(ks[8], (n_layers, d_model, d_inner)),
        b1=jnp.zeros((n_layers, 1, d_inner), jnp.float32),
        w2=w(ks[9], (n_layers, d_inner, d_model)),
        b2=jnp.zeros((n_layers, 1, d_model), jnp.float32),
        ln2_g=jnp.ones((n_layers, 1, d_model), jnp.float32),
        ln2_b=jnp.zeros((n_layers, 1, d_model), jnp.float32),
        lnf_g=jnp.ones((1, d_model), jnp.float32),
        lnf_b=jnp.zeros((1, d_model), jnp.float32),
    )


# ----------------------------- pure-JAX reference ------------------------------

def reference(x, params, n_layers, n_head, src_mask=None):
    B, L, D = x.shape
    d_k = D // n_head
    f32 = lambda a: a.astype(jnp.float32)
    x = x + params['pe'][:L][None]
    bias = (None if src_mask is None
            else jnp.where(src_mask, -1e30, 0.0).astype(jnp.float32))

    def ln(y, g, b, eps):
        mu = y.mean(-1, keepdims=True)
        var = ((y - mu) ** 2).mean(-1, keepdims=True)
        return (y - mu) / jnp.sqrt(var + eps) * g + b

    for l in range(n_layers):
        res = x
        q = (x @ f32(params['wq'][l]) + params['bq'][l]).reshape(B, L, n_head, d_k)
        k = (x @ f32(params['wk'][l]) + params['bk'][l]).reshape(B, L, n_head, d_k)
        v = (x @ f32(params['wv'][l]) + params['bv'][l]).reshape(B, L, n_head, d_k)
        attn = jnp.einsum('blhd,bmhd->bhlm', q, k) / (d_k ** 0.5)
        if bias is not None:
            attn = attn + bias[:, None]
        attn = jax.nn.softmax(attn, -1)
        ctx = jnp.einsum('bhlm,bmhd->blhd', attn, v).reshape(B, L, D)
        o = ctx @ f32(params['wo'][l]) + params['bo'][l]
        x = ln(o + res, params['ln1_g'][l], params['ln1_b'][l], 1e-5)
        res = x
        h1 = jax.nn.relu(x @ f32(params['w1'][l]) + params['b1'][l])
        f = h1 @ f32(params['w2'][l]) + params['b2'][l]
        x = ln(f + res, params['ln2_g'][l], params['ln2_b'][l], 1e-5)
    return ln(x, params['lnf_g'], params['lnf_b'], 1e-6)


# ----------------------------------- main ---------------------------------------

if __name__ == "__main__":
    # Small, module-consistent shapes (d_model divisible by n_head).
    B, L = 2, 8
    n_layers, n_head, d_model, d_inner, n_position = 2, 4, 32, 64, 16

    key = jax.random.PRNGKey(0)
    k_x, k_p = jax.random.split(key)
    x = jax.random.normal(k_x, (B, L, d_model), dtype=jnp.float32)
    params = init_params(k_p, n_layers, n_head, d_model, d_inner, n_position)

    # --- unmasked path (mask input completely skipped) ---
    out = transformer_encoder(x, params, src_mask=None,
                              n_layers=n_layers, n_head=n_head)
    out = jax.block_until_ready(out)
    ref = reference(x, params, n_layers, n_head, src_mask=None)
    assert out.shape == (B, L, d_model)
    assert jnp.all(jnp.isfinite(out))
    err = float(jnp.max(jnp.abs(out - ref)))
    assert jnp.allclose(out, ref, rtol=2e-2, atol=2e-2), f"max abs err {err}"

    # --- masked path (causal mask) exercises the int8-mask kernel variant ---
    causal = jnp.triu(jnp.ones((L, L), dtype=bool), k=1)
    src_mask = jnp.broadcast_to(causal, (B, L, L))
    out_m = jax.block_until_ready(
        transformer_encoder(x, params, src_mask=src_mask,
                            n_layers=n_layers, n_head=n_head))
    ref_m = reference(x, params, n_layers, n_head, src_mask=src_mask)
    err_m = float(jnp.max(jnp.abs(out_m - ref_m)))
    assert jnp.all(jnp.isfinite(out_m))
    assert jnp.allclose(out_m, ref_m, rtol=2e-2, atol=2e-2), f"max abs err {err_m}"

    print("KERNEL_OK")
</pallas_src>

<mosaic_0001>
module attributes {stable_mosaic.version = 11 : i64} {
  func.func @_encoder_kernel(%arg0: i32, %arg1: i32, %arg2: memref<1x8x32xf32, #tpu.memory_space<vmem>>, %arg3: memref<8x32xf32, #tpu.memory_space<vmem>>, %arg4: memref<2x32x32xbf16, #tpu.memory_space<vmem>>, %arg5: memref<2x32x32xbf16, #tpu.memory_space<vmem>>, %arg6: memref<2x32x32xbf16, #tpu.memory_space<vmem>>, %arg7: memref<2x32x32xbf16, #tpu.memory_space<vmem>>, %arg8: memref<2x32x64xbf16, #tpu.memory_space<vmem>>, %arg9: memref<2x64x32xbf16, #tpu.memory_space<vmem>>, %arg10: memref<2x10x64xf32, #tpu.memory_space<vmem>>, %arg11: memref<2x32xf32, #tpu.memory_space<vmem>>, %arg12: memref<1x8x32xf32, #tpu.memory_space<vmem>>, %arg13: memref<8x32xf32, #tpu.memory_space<vmem>>) attributes {dimension_semantics = [#tpu.dimension_semantics<parallel>, #tpu.dimension_semantics<arbitrary>], iteration_bounds = array<i64: 2, 2>, scalar_prefetch = 0 : i64, scratch_operands = 1 : i64, tpu.core_type = #tpu.core_type<tc>, window_params = [{transform_indices = @transform_0, window_bounds = array<i64: 1, 8, 32>}, {pipeline_mode = #tpu.pipeline_mode<synchronous>, transform_indices = @transform_1, window_bounds = array<i64: 8, 32>}, {pipeline_mode = #tpu.pipeline_mode<synchronous>, transform_indices = @transform_2, window_bounds = array<i64: 2, 32, 32>}, {pipeline_mode = #tpu.pipeline_mode<synchronous>, transform_indices = @transform_3, window_bounds = array<i64: 2, 32, 32>}, {pipeline_mode = #tpu.pipeline_mode<synchronous>, transform_indices = @transform_4, window_bounds = array<i64: 2, 32, 32>}, {pipeline_mode = #tpu.pipeline_mode<synchronous>, transform_indices = @transform_5, window_bounds = array<i64: 2, 32, 32>}, {pipeline_mode = #tpu.pipeline_mode<synchronous>, transform_indices = @transform_6, window_bounds = array<i64: 2, 32, 64>}, {pipeline_mode = #tpu.pipeline_mode<synchronous>, transform_indices = @transform_7, window_bounds = array<i64: 2, 64, 32>}, {pipeline_mode = #tpu.pipeline_mode<synchronous>, transform_indices = @transform_8, window_bounds = array<i64: 2, 10, 64>}, {pipeline_mode = #tpu.pipeline_mode<synchronous>, transform_indices = @transform_9, window_bounds = array<i64: 2, 32>}, {transform_indices = @transform_10, window_bounds = array<i64: 1, 8, 32>}]} {
    %c0_i32 = arith.constant 0 : i32
    %0 = arith.cmpi eq, %arg1, %c0_i32 : i32
    %1 = arith.extui %0 : i1 to i32
    %c0_i32_0 = arith.constant 0 : i32
    %2 = arith.cmpi ne, %1, %c0_i32_0 : i32
    scf.if %2 {
      %c0_41 = arith.constant 0 : index
      %c0_42 = arith.constant 0 : index
      %c0_43 = arith.constant 0 : index
      %139 = vector.load %arg2[%c0_41, %c0_42, %c0_43] : memref<1x8x32xf32, #tpu.memory_space<vmem>>, vector<1x8x32xf32>
      %140 = vector.shape_cast %139 : vector<1x8x32xf32> to vector<8x32xf32>
      %c0_44 = arith.constant 0 : index
      %c0_45 = arith.constant 0 : index
      %141 = vector.load %arg3[%c0_44, %c0_45] : memref<8x32xf32, #tpu.memory_space<vmem>>, vector<8x32xf32>
      %142 = arith.addf %140, %141 : vector<8x32xf32>
      %c0_46 = arith.constant 0 : index
      %c0_47 = arith.constant 0 : index
      %143 = vector.load %arg13[%c0_46, %c0_47] : memref<8x32xf32, #tpu.memory_space<vmem>>, vector<8x32xf32>
      tpu.vector_store %arg13[%c0_46, %c0_47], %142 {strides = array<i32>} : memref<8x32xf32, #tpu.memory_space<vmem>>, vector<8x32xf32>,
    } else {
    }
    %c0 = arith.constant 0 : index
    %c0_1 = arith.constant 0 : index
    %3 = vector.load %arg13[%c0, %c0_1] : memref<8x32xf32, #tpu.memory_space<vmem>>, vector<8x32xf32>
    %4 = arith.index_cast %arg1 : i32 to index
    %c0_2 = arith.constant 0 : index
    %c0_3 = arith.constant 0 : index
    %5 = vector.load %arg10[%4, %c0_2, %c0_3] : memref<2x10x64xf32, #tpu.memory_space<vmem>>, vector<1x10x64xf32>
    %6 = vector.shape_cast %5 : vector<1x10x64xf32> to vector<10x64xf32>
    %7 = vector.extract_strided_slice %6 {offsets = [0, 0], sizes = [1, 32], strides = [1, 1]} : vector<10x64xf32> to vector<1x32xf32>
    %8 = vector.extract_strided_slice %6 {offsets = [1, 0], sizes = [1, 32], strides = [1, 1]} : vector<10x64xf32> to vector<1x32xf32>
    %9 = vector.extract_strided_slice %6 {offsets = [2, 0], sizes = [1, 32], strides = [1, 1]} : vector<10x64xf32> to vector<1x32xf32>
    %10 = vector.extract_strided_slice %6 {offsets = [3, 0], sizes = [1, 32], strides = [1, 1]} : vector<10x64xf32> to vector<1x32xf32>
    %11 = vector.extract_strided_slice %6 {offsets = [4, 0], sizes = [1, 32], strides = [1, 1]} : vector<10x64xf32> to vector<1x32xf32>
    %12 = vector.extract_strided_slice %6 {offsets = [5, 0], sizes = [1, 32], strides = [1, 1]} : vector<10x64xf32> to vector<1x32xf32>
    %13 = vector.extract_strided_slice %6 {offsets = [6, 0], sizes = [1, 64], strides = [1, 1]} : vector<10x64xf32> to vector<1x64xf32>
    %14 = vector.extract_strided_slice %6 {offsets = [7, 0], sizes = [1, 32], strides = [1, 1]} : vector<10x64xf32> to vector<1x32xf32>
    %15 = vector.extract_strided_slice %6 {offsets = [8, 0], sizes = [1, 32], strides = [1, 1]} : vector<10x64xf32> to vector<1x32xf32>
    %16 = vector.extract_strided_slice %6 {offsets = [9, 0], sizes = [1, 32], strides = [1, 1]} : vector<10x64xf32> to vector<1x32xf32>
    %17 = arith.truncf %3 : vector<8x32xf32> to vector<8x32xbf16>
    %18 = arith.index_cast %arg1 : i32 to index
    %c0_4 = arith.constant 0 : index
    %c0_5 = arith.constant 0 : index
    %19 = vector.load %arg4[%18, %c0_4, %c0_5] : memref<2x32x32xbf16, #tpu.memory_space<vmem>>, vector<1x32x32xbf16>
    %20 = vector.shape_cast %19 : vector<1x32x32xbf16> to vector<32x32xbf16>
    %cst = arith.constant dense<0.000000e+00> : vector<8x32xf32>
    %21 = tpu.matmul %17, %20, %cst {dimension_numbers = #tpu.dot_dimension_numbers<[1], [0], [0], [1], [0, 0, 1, 1], [], []>} : vector<8x32xbf16>, vector<32x32xbf16>, vector<8x32xf32> -> vector<8x32xf32>
    %22 = vector.broadcast %7 : vector<1x32xf32> to vector<8x32xf32>
    %23 = arith.addf %21, %22 : vector<8x32xf32>
    %24 = arith.index_cast %arg1 : i32 to index
    %c0_6 = arith.constant 0 : index
    %c0_7 = arith.constant 0 : index
    %25 = vector.load %arg5[%24, %c0_6, %c0_7] : memref<2x32x32xbf16, #tpu.memory_space<vmem>>, vector<1x32x32xbf16>
    %26 = vector.shape_cast %25 : vector<1x32x32xbf16> to vector<32x32xbf16>
    %cst_8 = arith.constant dense<0.000000e+00> : vector<8x32xf32>
    %27 = tpu.matmul %17, %26, %cst_8 {dimension_numbers = #tpu.dot_dimension_numbers<[1], [0], [0], [1], [0, 0, 1, 1], [], []>} : vector<8x32xbf16>, vector<32x32xbf16>, vector<8x32xf32> -> vector<8x32xf32>
    %28 = vector.broadcast %8 : vector<1x32xf32> to vector<8x32xf32>
    %29 = arith.addf %27, %28 : vector<8x32xf32>
    %30 = arith.index_cast %arg1 : i32 to index
    %c0_9 = arith.constant 0 : index
    %c0_10 = arith.constant 0 : index
    %31 = vector.load %arg6[%30, %c0_9, %c0_10] : memref<2x32x32xbf16, #tpu.memory_space<vmem>>, vector<1x32x32xbf16>
    %32 = vector.shape_cast %31 : vector<1x32x32xbf16> to vector<32x32xbf16>
    %cst_11 = arith.constant dense<0.000000e+00> : vector<8x32xf32>
    %33 = tpu.matmul %17, %32, %cst_11 {dimension_numbers = #tpu.dot_dimension_numbers<[1], [0], [0], [1], [0, 0, 1, 1], [], []>} : vector<8x32xbf16>, vector<32x32xbf16>, vector<8x32xf32> -> vector<8x32xf32>
    %34 = vector.broadcast %9 : vector<1x32xf32> to vector<8x32xf32>
    %35 = arith.addf %33, %34 : vector<8x32xf32>
    %36 = arith.truncf %23 : vector<8x32xf32> to vector<8x32xbf16>
    %37 = vector.shape_cast %36 : vector<8x32xbf16> to vector<8x4x8xbf16>
    %38 = tpu.transpose %37, [1, 0, 2] : vector<8x4x8xbf16> -> vector<4x8x8xbf16>
    %39 = arith.truncf %29 : vector<8x32xf32> to vector<8x32xbf16>
    %40 = vector.shape_cast %39 : vector<8x32xbf16> to vector<8x4x8xbf16>
    %41 = tpu.transpose %40, [1, 0, 2] : vector<8x4x8xbf16> -> vector<4x8x8xbf16>
    %42 = arith.truncf %35 : vector<8x32xf32> to vector<8x32xbf16>
    %43 = vector.shape_cast %42 : vector<8x32xbf16> to vector<8x4x8xbf16>
    %44 = tpu.transpose %43, [1, 0, 2] : vector<8x4x8xbf16> -> vector<4x8x8xbf16>
    "tpu.trace_start"() <{level = 10 : i32, message = "hld,hmd->hlm"}> : () -> ()
    %cst_12 = arith.constant dense<0.000000e+00> : vector<4x8x8xf32>
    %45 = tpu.matmul %38, %41, %cst_12 {dimension_numbers = #tpu.dot_dimension_numbers<[2], [2], [1], [1], [0, 0, 0, 1, 1, 1], [0], [0]>} : vector<4x8x8xbf16>, vector<4x8x8xbf16>, vector<4x8x8xf32> -> vector<4x8x8xf32>
    "tpu.trace_stop"() : () -> ()
    %cst_13 = arith.constant dense<0xFF800000> : vector<4x8xf32>
    %46 = vector.multi_reduction <maximumf>, %45, %cst_13 [2] : vector<4x8x8xf32> to vector<4x8xf32>
    %47 = vector.shape_cast %46 : vector<4x8xf32> to vector<4x8x1xf32>
    %48 = vector.broadcast %47 : vector<4x8x1xf32> to vector<4x8x8xf32>
    %49 = arith.subf %45, %48 : vector<4x8x8xf32>
    %50 = math.exp %49 : vector<4x8x8xf32>
    %cst_14 = arith.constant dense<0.000000e+00> : vector<4x8xf32>
    %51 = vector.multi_reduction <add>, %50, %cst_14 [2] : vector<4x8x8xf32> to vector<4x8xf32>
    %52 = vector.shape_cast %51 : vector<4x8xf32> to vector<4x8x1xf32>
    %53 = arith.truncf %50 : vector<4x8x8xf32> to vector<4x8x8xbf16>
    "tpu.trace_start"() <{level = 10 : i32, message = "hlm,hmd->hld"}> : () -> ()
    %cst_15 = arith.constant dense<0.000000e+00> : vector<4x8x8xf32>
    %54 = tpu.matmul %53, %44, %cst_15 {dimension_numbers = #tpu.dot_dimension_numbers<[2], [1], [1], [2], [0, 0, 0, 1, 1, 2], [0], [0]>} : vector<4x8x8xbf16>, vector<4x8x8xbf16>, vector<4x8x8xf32> -> vector<4x8x8xf32>
    "tpu.trace_stop"() : () -> ()
    %55 = tpu.reciprocal %52 {approx = true} : vector<4x8x1xf32> -> vector<4x8x1xf32>
    %56 = vector.broadcast %55 : vector<4x8x1xf32> to vector<4x8x8xf32>
    %57 = arith.mulf %54, %56 : vector<4x8x8xf32>
    %58 = arith.truncf %57 : vector<4x8x8xf32> to vector<4x8x8xbf16>
    %59 = tpu.transpose %58, [1, 0, 2] : vector<4x8x8xbf16> -> vector<8x4x8xbf16>
    %60 = vector.shape_cast %59 : vector<8x4x8xbf16> to vector<8x32xbf16>
    %61 = arith.index_cast %arg1 : i32 to index
    %c0_16 = arith.constant 0 : index
    %c0_17 = arith.constant 0 : index
    %62 = vector.load %arg7[%61, %c0_16, %c0_17] : memref<2x32x32xbf16, #tpu.memory_space<vmem>>, vector<1x32x32xbf16>
    %63 = vector.shape_cast %62 : vector<1x32x32xbf16> to vector<32x32xbf16>
    %cst_18 = arith.constant dense<0.000000e+00> : vector<8x32xf32>
    %64 = tpu.matmul %60, %63, %cst_18 {dimension_numbers = #tpu.dot_dimension_numbers<[1], [0], [0], [1], [0, 0, 1, 1], [], []>} : vector<8x32xbf16>, vector<32x32xbf16>, vector<8x32xf32> -> vector<8x32xf32>
    %65 = vector.broadcast %10 : vector<1x32xf32> to vector<8x32xf32>
    %66 = arith.addf %64, %65 : vector<8x32xf32>
    %67 = arith.addf %66, %3 : vector<8x32xf32>
    %cst_19 = arith.constant dense<0.000000e+00> : vector<8xf32>
    %68 = vector.multi_reduction <add>, %67, %cst_19 [1] : vector<8x32xf32> to vector<8xf32>
    %69 = vector.shape_cast %68 : vector<8xf32> to vector<8x1xf32>
    %cst_20 = arith.constant 3.200000e+01 : f32
    %70 = vector.broadcast %cst_20 : f32 to vector<8x1xf32>
    %71 = arith.divf %69, %70 : vector<8x1xf32>
    %72 = arith.mulf %67, %67 : vector<8x32xf32>
    %cst_21 = arith.constant dense<0.000000e+00> : vector<8xf32>
    %73 = vector.multi_reduction <add>, %72, %cst_21 [1] : vector<8x32xf32> to vector<8xf32>
    %74 = vector.shape_cast %73 : vector<8xf32> to vector<8x1xf32>
    %cst_22 = arith.constant 3.200000e+01 : f32
    %75 = vector.broadcast %cst_22 : f32 to vector<8x1xf32>
    %76 = arith.divf %74, %75 : vector<8x1xf32>
    %77 = arith.mulf %71, %71 : vector<8x1xf32>
    %78 = arith.subf %76, %77 : vector<8x1xf32>
    %cst_23 = arith.constant 0.000000e+00 : f32
    %79 = vector.broadcast %cst_23 : f32 to vector<8x1xf32>
    %80 = arith.maximumf %78, %79 : vector<8x1xf32>
    %cst_24 = arith.constant 9.99999974E-6 : f32
    %81 = vector.broadcast %cst_24 : f32 to vector<8x1xf32>
    %82 = arith.addf %80, %81 : vector<8x1xf32>
    %83 = math.rsqrt %82 : vector<8x1xf32>
    %84 = vector.broadcast %71 : vector<8x1xf32> to vector<8x32xf32>
    %85 = arith.subf %67, %84 : vector<8x32xf32>
    %86 = vector.broadcast %83 : vector<8x1xf32> to vector<8x32xf32>
    %87 = vector.broadcast %11 : vector<1x32xf32> to vector<8x32xf32>
    %88 = arith.mulf %86, %87 : vector<8x32xf32>
    %89 = arith.mulf %85, %88 : vector<8x32xf32>
    %90 = vector.broadcast %12 : vector<1x32xf32> to vector<8x32xf32>
    %91 = arith.addf %89, %90 : vector<8x32xf32>
    %92 = arith.truncf %91 : vector<8x32xf32> to vector<8x32xbf16>
    %93 = arith.index_cast %arg1 : i32 to index
    %c0_25 = arith.constant 0 : index
    %c0_26 = arith.constant 0 : index
    %94 = vector.load %arg8[%93, %c0_25, %c0_26] : memref<2x32x64xbf16, #tpu.memory_space<vmem>>, vector<1x32x64xbf16>
    %95 = vector.shape_cast %94 : vector<1x32x64xbf16> to vector<32x64xbf16>
    %cst_27 = arith.constant dense<0.000000e+00> : vector<8x64xf32>
    %96 = tpu.matmul %92, %95, %cst_27 {dimension_numbers = #tpu.dot_dimension_numbers<[1], [0], [0], [1], [0, 0, 1, 1], [], []>} : vector<8x32xbf16>, vector<32x64xbf16>, vector<8x64xf32> -> vector<8x64xf32>
    %97 = vector.broadcast %13 : vector<1x64xf32> to vector<8x64xf32>
    %98 = arith.addf %96, %97 : vector<8x64xf32>
    %cst_28 = arith.constant 0.000000e+00 : f32
    %99 = vector.broadcast %cst_28 : f32 to vector<8x64xf32>
    %100 = arith.maximumf %98, %99 : vector<8x64xf32>
    %101 = arith.truncf %100 : vector<8x64xf32> to vector<8x64xbf16>
    %102 = arith.index_cast %arg1 : i32 to index
    %c0_29 = arith.constant 0 : index
    %c0_30 = arith.constant 0 : index
    %103 = vector.load %arg9[%102, %c0_29, %c0_30] : memref<2x64x32xbf16, #tpu.memory_space<vmem>>, vector<1x64x32xbf16>
    %104 = vector.shape_cast %103 : vector<1x64x32xbf16> to vector<64x32xbf16>
    %cst_31 = arith.constant dense<0.000000e+00> : vector<8x32xf32>
    %105 = tpu.matmul %101, %104, %cst_31 {dimension_numbers = #tpu.dot_dimension_numbers<[1], [0], [0], [1], [0, 0, 1, 1], [], []>} : vector<8x64xbf16>, vector<64x32xbf16>, vector<8x32xf32> -> vector<8x32xf32>
    %106 = vector.broadcast %14 : vector<1x32xf32> to vector<8x32xf32>
    %107 = arith.addf %105, %106 : vector<8x32xf32>
    %108 = arith.addf %107, %91 : vector<8x32xf32>
    %cst_32 = arith.constant dense<0.000000e+00> : vector<8xf32>
    %109 = vector.multi_reduction <add>, %108, %cst_32 [1] : vector<8x32xf32> to vector<8xf32>
    %110 = vector.shape_cast %109 : vector<8xf32> to vector<8x1xf32>
    %cst_33 = arith.constant 3.200000e+01 : f32
    %111 = vector.broadcast %cst_33 : f32 to vector<8x1xf32>
    %112 = arith.divf %110, %111 : vector<8x1xf32>
    %113 = arith.mulf %108, %108 : vector<8x32xf32>
    %cst_34 = arith.constant dense<0.000000e+00> : vector<8xf32>
    %114 = vector.multi_reduction <add>, %113, %cst_34 [1] : vector<8x32xf32> to vector<8xf32>
    %115 = vector.shape_cast %114 : vector<8xf32> to vector<8x1xf32>
    %cst_35 = arith.constant 3.200000e+01 : f32
    %116 = vector.broadcast %cst_35 : f32 to vector<8x1xf32>
    %117 = arith.divf %115, %116 : vector<8x1xf32>
    %118 = arith.mulf %112, %112 : vector<8x1xf32>
    %119 = arith.subf %117, %118 : vector<8x1xf32>
    %cst_36 = arith.constant 0.000000e+00 : f32
    %120 = vector.broadcast %cst_36 : f32 to vector<8x1xf32>
    %121 = arith.maximumf %119, %120 : vector<8x1xf32>
    %cst_37 = arith.constant 9.99999974E-6 : f32
    %122 = vector.broadcast %cst_37 : f32 to vector<8x1xf32>
    %123 = arith.addf %121, %122 : vector<8x1xf32>
    %124 = math.rsqrt %123 : vector<8x1xf32>
    %125 = vector.broadcast %112 : vector<8x1xf32> to vector<8x32xf32>
    %126 = arith.subf %108, %125 : vector<8x32xf32>
    %127 = vector.broadcast %124 : vector<8x1xf32> to vector<8x32xf32>
    %128 = vector.broadcast %15 : vector<1x32xf32> to vector<8x32xf32>
    %129 = arith.mulf %127, %128 : vector<8x32xf32>
    %130 = arith.mulf %126, %129 : vector<8x32xf32>
    %131 = vector.broadcast %16 : vector<1x32xf32> to vector<8x32xf32>
    %132 = arith.addf %130, %131 : vector<8x32xf32>
    %c1_i32 = arith.constant 1 : i32
    %133 = arith.cmpi ne, %arg1, %c1_i32 : i32
    %134 = arith.extui %133 : i1 to i32
    %c0_i32_38 = arith.constant 0 : i32
    %135 = arith.cmpi ne, %134, %c0_i32_38 : i32
    scf.if %135 {
      %c0_41 = arith.constant 0 : index
      %c0_42 = arith.constant 0 : index
      %139 = vector.load %arg13[%c0_41, %c0_42] : memref<8x32xf32, #tpu.memory_space<vmem>>, vector<8x32xf32>
      tpu.vector_store %arg13[%c0_41, %c0_42], %132 {strides = array<i32>} : memref<8x32xf32, #tpu.memory_space<vmem>>, vector<8x32xf32>,
    } else {
    }
    %c1_i32_39 = arith.constant 1 : i32
    %136 = arith.cmpi eq, %arg1, %c1_i32_39 : i32
    %137 = arith.extui %136 : i1 to i32
    %c0_i32_40 = arith.constant 0 : i32
    %138 = arith.cmpi ne, %137, %c0_i32_40 : i32
    scf.if %138 {
      %c0_41 = arith.constant 0 : index
      %c0_42 = arith.constant 0 : index
      %139 = vector.load %arg11[%c0_41, %c0_42] : memref<2x32xf32, #tpu.memory_space<vmem>>, vector<1x32xf32>
      %c1 = arith.constant 1 : index
      %c0_43 = arith.constant 0 : index
      %140 = vector.load %arg11[%c1, %c0_43] : memref<2x32xf32, #tpu.memory_space<vmem>>, vector<1x32xf32>
      %cst_44 = arith.constant dense<0.000000e+00> : vector<8xf32>
      %141 = vector.multi_reduction <add>, %132, %cst_44 [1] : vector<8x32xf32> to vector<8xf32>
      %142 = vector.shape_cast %141 : vector<8xf32> to vector<8x1xf32>
      %cst_45 = arith.constant 3.200000e+01 : f32
      %143 = vector.broadcast %cst_45 : f32 to vector<8x1xf32>
      %144 = arith.divf %142, %143 : vector<8x1xf32>
      %145 = arith.mulf %132, %132 : vector<8x32xf32>
      %cst_46 = arith.constant dense<0.000000e+00> : vector<8xf32>
      %146 = vector.multi_reduction <add>, %145, %cst_46 [1] : vector<8x32xf32> to vector<8xf32>
      %147 = vector.shape_cast %146 : vector<8xf32> to vector<8x1xf32>
      %cst_47 = arith.constant 3.200000e+01 : f32
      %148 = vector.broadcast %cst_47 : f32 to vector<8x1xf32>
      %149 = arith.divf %147, %148 : vector<8x1xf32>
      %150 = arith.mulf %144, %144 : vector<8x1xf32>
      %151 = arith.subf %149, %150 : vector<8x1xf32>
      %cst_48 = arith.constant 0.000000e+00 : f32
      %152 = vector.broadcast %cst_48 : f32 to vector<8x1xf32>
      %153 = arith.maximumf %151, %152 : vector<8x1xf32>
      %cst_49 = arith.constant 9.99999997E-7 : f32
      %154 = vector.broadcast %cst_49 : f32 to vector<8x1xf32>
      %155 = arith.addf %153, %154 : vector<8x1xf32>
      %156 = math.rsqrt %155 : vector<8x1xf32>
      %157 = vector.broadcast %144 : vector<8x1xf32> to vector<8x32xf32>
      %158 = arith.subf %132, %157 : vector<8x32xf32>
      %159 = vector.broadcast %156 : vector<8x1xf32> to vector<8x32xf32>
      %160 = vector.broadcast %139 : vector<1x32xf32> to vector<8x32xf32>
      %161 = arith.mulf %159, %160 : vector<8x32xf32>
      %162 = arith.mulf %158, %161 : vector<8x32xf32>
      %163 = vector.broadcast %140 : vector<1x32xf32> to vector<8x32xf32>
      %164 = arith.addf %162, %163 : vector<8x32xf32>
      %c0_50 = arith.constant 0 : index
      %c0_51 = arith.constant 0 : index
      %c0_52 = arith.constant 0 : index
      %165 = vector.load %arg12[%c0_50, %c0_51, %c0_52] : memref<1x8x32xf32, #tpu.memory_space<vmem>>, vector<1x8x32xf32>
      %166 = vector.shape_cast %165 : vector<1x8x32xf32> to vector<8x32xf32>
      %167 = vector.shape_cast %164 : vector<8x32xf32> to vector<1x8x32xf32>
      tpu.vector_store %arg12[%c0_50, %c0_51, %c0_52], %167 {strides = array<i32>} : memref<1x8x32xf32, #tpu.memory_space<vmem>>, vector<1x8x32xf32>,
    } else {
    }
    return
  }
  func.func @transform_0(%arg0: i32, %arg1: i32) -> (i32, i32, i32) {
    %c0_i32 = arith.constant 0 : i32
    %c0_i32_0 = arith.constant 0 : i32
    %c0_i32_1 = arith.constant 0 : i32
    return %arg0, %c0_i32, %c0_i32_0 : i32, i32, i32
  }
  func.func @transform_1(%arg0: i32, %arg1: i32) -> (i32, i32) {
    %c0_i32 = arith.constant 0 : i32
    %c0_i32_0 = arith.constant 0 : i32
    %c0_i32_1 = arith.constant 0 : i32
    return %c0_i32, %c0_i32_0 : i32, i32
  }
  func.func @transform_2(%arg0: i32, %arg1: i32) -> (i32, i32, i32) {
    %c0_i32 = arith.constant 0 : i32
    %c0_i32_0 = arith.constant 0 : i32
    %c0_i32_1 = arith.constant 0 : i32
    %c0_i32_2 = arith.constant 0 : i32
    return %c0_i32, %c0_i32_0, %c0_i32_1 : i32, i32, i32
  }
  func.func @transform_3(%arg0: i32, %arg1: i32) -> (i32, i32, i32) {
    %c0_i32 = arith.constant 0 : i32
    %c0_i32_0 = arith.constant 0 : i32
    %c0_i32_1 = arith.constant 0 : i32
    %c0_i32_2 = arith.constant 0 : i32
    return %c0_i32, %c0_i32_0, %c0_i32_1 : i32, i32, i32
  }
  func.func @transform_4(%arg0: i32, %arg1: i32) -> (i32, i32, i32) {
    %c0_i32 = arith.constant 0 : i32
    %c0_i32_0 = arith.constant 0 : i32
    %c0_i32_1 = arith.constant 0 : i32
    %c0_i32_2 = arith.constant 0 : i32
    return %c0_i32, %c0_i32_0, %c0_i32_1 : i32, i32, i32
  }
  func.func @transform_5(%arg0: i32, %arg1: i32) -> (i32, i32, i32) {
    %c0_i32 = arith.constant 0 : i32
    %c0_i32_0 = arith.constant 0 : i32
    %c0_i32_1 = arith.constant 0 : i32
    %c0_i32_2 = arith.constant 0 : i32
    return %c0_i32, %c0_i32_0, %c0_i32_1 : i32, i32, i32
  }
  func.func @transform_6(%arg0: i32, %arg1: i32) -> (i32, i32, i32) {
    %c0_i32 = arith.constant 0 : i32
    %c0_i32_0 = arith.constant 0 : i32
    %c0_i32_1 = arith.constant 0 : i32
    %c0_i32_2 = arith.constant 0 : i32
    return %c0_i32, %c0_i32_0, %c0_i32_1 : i32, i32, i32
  }
  func.func @transform_7(%arg0: i32, %arg1: i32) -> (i32, i32, i32) {
    %c0_i32 = arith.constant 0 : i32
    %c0_i32_0 = arith.constant 0 : i32
    %c0_i32_1 = arith.constant 0 : i32
    %c0_i32_2 = arith.constant 0 : i32
    return %c0_i32, %c0_i32_0, %c0_i32_1 : i32, i32, i32
  }
  func.func @transform_8(%arg0: i32, %arg1: i32) -> (i32, i32, i32) {
    %c0_i32 = arith.constant 0 : i32
    %c0_i32_0 = arith.constant 0 : i32
    %c0_i32_1 = arith.constant 0 : i32
    %c0_i32_2 = arith.constant 0 : i32
    return %c0_i32, %c0_i32_0, %c0_i32_1 : i32, i32, i32
  }
  func.func @transform_9(%arg0: i32, %arg1: i32) -> (i32, i32) {
    %c0_i32 = arith.constant 0 : i32
    %c0_i32_0 = arith.constant 0 : i32
    %c0_i32_1 = arith.constant 0 : i32
    return %c0_i32, %c0_i32_0 : i32, i32
  }
  func.func @transform_10(%arg0: i32, %arg1: i32) -> (i32, i32, i32) {
    %c0_i32 = arith.constant 0 : i32
    %c0_i32_0 = arith.constant 0 : i32
    %c0_i32_1 = arith.constant 0 : i32
    return %arg0, %c0_i32, %c0_i32_0 : i32, i32, i32
  }
}

</mosaic_0001>

<llo_original>
// kernel: tpu_custom_call.1
$region0: #{tpu_custom_call.1}
  #allocation0 [shape = 'u32[]', space=smem, size = 0x4, offset = 0x4, fixed_abs, tag = 'smem constant byte address 0x4 - core index']
  #allocation1 [shape = 'u32[144,128]{1,0:T(1,128)}', space=vmem, size = 0x12000, scoped, tag = 'internal scratch']
  #allocation2 [shape = 'f32[8,32]{1,0:T(8,128)}', space=vmem, size = 0x1000, scoped, tag = 'scratch operand']
  %s0 = inlined_call_operand.hbm [shape: f32[2,8,32], index: 0, kind: input, shape index: {}]
  %s1 = inlined_call_operand.hbm [shape: f32[8,32], index: 1, kind: input, shape index: {}]
  %s2 = inlined_call_operand.vmem [shape: bf16[2,32,32], index: 2, kind: input, shape index: {}]
  %s3 = inlined_call_operand.vmem [shape: bf16[2,32,32], index: 3, kind: input, shape index: {}]
  %s4 = inlined_call_operand.vmem [shape: bf16[2,32,32], index: 4, kind: input, shape index: {}]
  %s5 = inlined_call_operand.vmem [shape: bf16[2,32,32], index: 5, kind: input, shape index: {}]
  %s6 = inlined_call_operand.hbm [shape: bf16[2,32,64], index: 6, kind: input, shape index: {}]
  %s7 = inlined_call_operand.vmem [shape: bf16[2,64,32], index: 7, kind: input, shape index: {}]
  %s8 = inlined_call_operand.vmem [shape: f32[2,10,64], index: 8, kind: input, shape index: {}]
  %s9 = inlined_call_operand.vmem [shape: f32[2,32], index: 9, kind: input, shape index: {}]
  %s10 = inlined_call_operand.hbm [shape: f32[2,8,32], index: 10, kind: output, shape index: {}]
  %s11 = sld [smem:[#allocation0]]
  $region97: #{tpu_custom_call.1} parent=0
    _
  %s13 = ssub.s32 1, %s11
  %s14 = scalar_select 0, %s13, %s11
  $region1: #{tpu_custom_call.1} parent=0
    #allocation3 [shape = 'u8[8192]{0}', space=vmem, size = 0x2000, scoped, tag = 'input window, operand 0']
    #allocation4 [shape = 's32[2]{0}', space=sflag, size = 0x8, scoped, tag = 'scoped memory for tpu_custom_call.1']
    #allocation5 [shape = 's32[2]{0}', space=sflag, size = 0x8, scoped, tag = 'scoped memory for tpu_custom_call.1']
    #allocation6 [shape = 'u8[4096]{0}', space=vmem, size = 0x1000, scoped, tag = 'input window, operand 1, single buffered']
    #allocation7 [shape = 's32[1]{0}', space=sflag, size = 0x4, scoped, tag = 'scoped memory for tpu_custom_call.1']
    #allocation8 [shape = 'u8[16384]{0}', space=vmem, size = 0x4000, scoped, tag = 'input window, operand 6, single buffered']
    #allocation9 [shape = 'u8[8192]{0}', space=vmem, size = 0x2000, scoped, tag = 'output window, operand 0']
    %15 = vsyncpa [#allocation4], 0
    %s16 = scalar_lea.sflag [#allocation4], 1
    %17 = vsyncpa %s16, 0
    %18 = vsyncpa [#allocation7], 0
    %19 = vsyncpa [#allocation5], 0
    %s20 = scalar_lea.sflag [#allocation5], 1
    %21 = vsyncpa %s20, 0
    loop: start=0, step=1, limit=6
    $region2: #{tpu_custom_call.1} parent=1 // loop_pre_header
      _
    $region3: #{tpu_custom_call.1} parent=1 // loop_header
      %s23 = sphi 0, %s27
      %p24 = scmp.ge.s32.totalorder %s23, 6
      %s30 = sphi 0, %s42
      %s31 = sphi 0, %s38
      %s32 = sphi 0, %s30
      %s33 = sphi 0, %s31
      %s34 = sphi 0, %s32
      %s35 = sphi 0, %s33
      %s45 = sphi 0, %s47
      %s48 = sphi 0, %s45
      %s49 = sphi 0, %s48
      %s65 = sphi 0, %s49
      %s69 = sphi 0, %s69
      %s71 = sphi 0, %s69
      %s72 = sphi 0, %s71
      %s86 = sphi 0, %s72
      %s90 = sphi 0, %s90
      %s92 = sphi 0, %s90
      %s93 = sphi 0, %s92
      %s107 = sphi 0, %s93
      %s111 = sphi 0, %s111
      %s113 = sphi 0, %s111
      %s114 = sphi 0, %s113
      %s128 = sphi 0, %s114
      %s132 = sphi 0, %s132
      %s134 = sphi 0, %s132
      %s135 = sphi 0, %s134
      %s149 = sphi 0, %s135
      %s153 = sphi 0, %s153
      %s155 = sphi 0, %s153
      %s156 = sphi 0, %s155
      %s170 = sphi 0, %s156
      %s174 = sphi 0, %s174
      %s176 = sphi 0, %s174
      %s177 = sphi 0, %s176
      %s191 = sphi 0, %s177
      %s195 = sphi 0, %s195
      %s197 = sphi 0, %s195
      %s198 = sphi 0, %s197
      %s212 = sphi 0, %s198
      %s216 = sphi 0, %s216
      %s218 = sphi 0, %s216
      %s219 = sphi 0, %s218
      %s233 = sphi 0, %s219
      %s237 = sphi 0, %s237
      %s239 = sphi 0, %s237
      %s240 = sphi 0, %s239
      %s254 = sphi 0, %s240
      %s260 = sphi 0, %s262
      %s263 = sphi 0, %s260
      %s264 = sphi 0, %s263
      %s280 = sphi 0, %s264
    $region4: #{tpu_custom_call.1} parent=1 // loop_header_branch
      %26 = sbr.rel (%p24) target = $region8
    $region5: #{tpu_custom_call.1} parent=1 // loop_body
      %s28 = ssub.s32 %s23, 1
      %s29 = ssub.s32 %s23, 2
      %s36 = sadd.s32 1, %s31
      %p37 = scmp.ge.s32.totalorder %s36, 2
      %s38 = scalar_select %p37, 0, %s36
      %s39 = sadd.s32 1, %s30
      %s40 = scalar_select %p37, %s39, %s30
      %p41 = scmp.ge.s32.totalorder %s40, 2
      %s42 = scalar_select %p41, 0, %s40
      %s43 = ssub.s32 %s30, %s42
      %p44 = scmp.eq.s32.totalorder %s43, 0
      %s46 = sadd.s32 %s45, 1
      %s47 = scalar_select %p44, %s45, %s46
      %p50 = pneg %p44
      %p51 = scmp.eq.s32.totalorder %s23, 3
      %p52 = por %p50, %p51
      %p53 = scmp.ne.s32.totalorder %s45, %s48
      %p54 = scmp.eq.s32.totalorder %s23, 0
      %p55 = por %p53, %p54
      %p56 = scmp.ne.s32.totalorder %s45, %s48
      %p57 = scmp.eq.s32.totalorder %s28, 3
      %p58 = por %p56, %p57
      %p59 = scmp.ne.s32.totalorder %s48, %s49
      %p60 = scmp.eq.s32.totalorder %s28, 0
      %p61 = por %p59, %p60
      %p62 = scmp.ne.s32.totalorder %s48, %s49
      %p63 = scmp.eq.s32.totalorder %s29, 3
      %p64 = por %p62, %p63
      %p66 = scmp.ne.s32.totalorder %s49, %s65
      %p67 = scmp.eq.s32.totalorder %s29, 0
      %p68 = por %p66, %p67
      %s70 = sadd.s32 %s69, 1
      %p73 = scmp.eq.s32.totalorder %s23, 3
      %p74 = scmp.ne.s32.totalorder %s69, %s71
      %p75 = scmp.eq.s32.totalorder %s23, 0
      %p76 = por %p74, %p75
      %p77 = scmp.ne.s32.totalorder %s69, %s71
      %p78 = scmp.eq.s32.totalorder %s28, 3
      %p79 = por %p77, %p78
      %p80 = scmp.ne.s32.totalorder %s71, %s72
      %p81 = scmp.eq.s32.totalorder %s28, 0
      %p82 = por %p80, %p81
      %p83 = scmp.ne.s32.totalorder %s71, %s72
      %p84 = scmp.eq.s32.totalorder %s29, 3
      %p85 = por %p83, %p84
      %p87 = scmp.ne.s32.totalorder %s72, %s86
      %p88 = scmp.eq.s32.totalorder %s29, 0
      %p89 = por %p87, %p88
      %s91 = sadd.s32 %s90, 1
      %p94 = scmp.eq.s32.totalorder %s23, 3
      %p95 = scmp.ne.s32.totalorder %s90, %s92
      %p96 = scmp.eq.s32.totalorder %s23, 0
      %p97 = por %p95, %p96
      %p98 = scmp.ne.s32.totalorder %s90, %s92
      %p99 = scmp.eq.s32.totalorder %s28, 3
      %p100 = por %p98, %p99
      %p101 = scmp.ne.s32.totalorder %s92, %s93
      %p102 = scmp.eq.s32.totalorder %s28, 0
      %p103 = por %p101, %p102
      %p104 = scmp.ne.s32.totalorder %s92, %s93
      %p105 = scmp.eq.s32.totalorder %s29, 3
      %p106 = por %p104, %p105
      %p108 = scmp.ne.s32.totalorder %s93, %s107
      %p109 = scmp.eq.s32.totalorder %s29, 0
      %p110 = por %p108, %p109
      %s112 = sadd.s32 %s111, 1
      %p115 = scmp.eq.s32.totalorder %s23, 3
      %p116 = scmp.ne.s32.totalorder %s111, %s113
      %p117 = scmp.eq.s32.totalorder %s23, 0
      %p118 = por %p116, %p117
      %p119 = scmp.ne.s32.totalorder %s111, %s113
      %p120 = scmp.eq.s32.totalorder %s28, 3
      %p121 = por %p119, %p120
      %p122 = scmp.ne.s32.totalorder %s113, %s114
      %p123 = scmp.eq.s32.totalorder %s28, 0
      %p124 = por %p122, %p123
      %p125 = scmp.ne.s32.totalorder %s113, %s114
      %p126 = scmp.eq.s32.totalorder %s29, 3
      %p127 = por %p125, %p126
      %p129 = scmp.ne.s32.totalorder %s114, %s128
      %p130 = scmp.eq.s32.totalorder %s29, 0
      %p131 = por %p129, %p130
      %s133 = sadd.s32 %s132, 1
      %p136 = scmp.eq.s32.totalorder %s23, 3
      %p137 = scmp.ne.s32.totalorder %s132, %s134
      %p138 = scmp.eq.s32.totalorder %s23, 0
      %p139 = por %p137, %p138
      %p140 = scmp.ne.s32.totalorder %s132, %s134
      %p141 = scmp.eq.s32.totalorder %s28, 3
      %p142 = por %p140, %p141
      %p143 = scmp.ne.s32.totalorder %s134, %s135
      %p144 = scmp.eq.s32.totalorder %s28, 0
      %p145 = por %p143, %p144
      %p146 = scmp.ne.s32.totalorder %s134, %s135
      %p147 = scmp.eq.s32.totalorder %s29, 3
      %p148 = por %p146, %p147
      %p150 = scmp.ne.s32.totalorder %s135, %s149
      %p151 = scmp.eq.s32.totalorder %s29, 0
      %p152 = por %p150, %p151
      %s154 = sadd.s32 %s153, 1
      %p157 = scmp.eq.s32.totalorder %s23, 3
      %p158 = scmp.ne.s32.totalorder %s153, %s155
      %p159 = scmp.eq.s32.totalorder %s23, 0
      %p160 = por %p158, %p159
      %p161 = scmp.ne.s32.totalorder %s153, %s155
      %p162 = scmp.eq.s32.totalorder %s28, 3
      %p163 = por %p161, %p162
      %p164 = scmp.ne.s32.totalorder %s155, %s156
      %p165 = scmp.eq.s32.totalorder %s28, 0
      %p166 = por %p164, %p165
      %p167 = scmp.ne.s32.totalorder %s155, %s156
      %p168 = scmp.eq.s32.totalorder %s29, 3
      %p169 = por %p167, %p168
      %p171 = scmp.ne.s32.totalorder %s156, %s170
      %p172 = scmp.eq.s32.totalorder %s29, 0
      %p173 = por %p171, %p172
      %s175 = sadd.s32 %s174, 1
      %p178 = scmp.eq.s32.totalorder %s23, 3
      %p179 = scmp.ne.s32.totalorder %s174, %s176
      %p180 = scmp.eq.s32.totalorder %s23, 0
      %p181 = por %p179, %p180
      %p182 = scmp.ne.s32.totalorder %s174, %s176
      %p183 = scmp.eq.s32.totalorder %s28, 3
      %p184 = por %p182, %p183
      %p185 = scmp.ne.s32.totalorder %s176, %s177
      %p186 = scmp.eq.s32.totalorder %s28, 0
      %p187 = por %p185, %p186
      %p188 = scmp.ne.s32.totalorder %s176, %s177
      %p189 = scmp.eq.s32.totalorder %s29, 3
      %p190 = por %p188, %p189
      %p192 = scmp.ne.s32.totalorder %s177, %s191
      %p193 = scmp.eq.s32.totalorder %s29, 0
      %p194 = por %p192, %p193
      %s196 = sadd.s32 %s195, 1
      %p199 = scmp.eq.s32.totalorder %s23, 3
      %p200 = scmp.ne.s32.totalorder %s195, %s197
      %p201 = scmp.eq.s32.totalorder %s23, 0
      %p202 = por %p200, %p201
      %p203 = scmp.ne.s32.totalorder %s195, %s197
      %p204 = scmp.eq.s32.totalorder %s28, 3
      %p205 = por %p203, %p204
      %p206 = scmp.ne.s32.totalorder %s197, %s198
      %p207 = scmp.eq.s32.totalorder %s28, 0
      %p208 = por %p206, %p207
      %p209 = scmp.ne.s32.totalorder %s197, %s198
      %p210 = scmp.eq.s32.totalorder %s29, 3
      %p211 = por %p209, %p210
      %p213 = scmp.ne.s32.totalorder %s198, %s212
      %p214 = scmp.eq.s32.totalorder %s29, 0
      %p215 = por %p213, %p214
      %s217 = sadd.s32 %s216, 1
      %p220 = scmp.eq.s32.totalorder %s23, 3
      %p221 = scmp.ne.s32.totalorder %s216, %s218
      %p222 = scmp.eq.s32.totalorder %s23, 0
      %p223 = por %p221, %p222
      %p224 = scmp.ne.s32.totalorder %s216, %s218
      %p225 = scmp.eq.s32.totalorder %s28, 3
      %p226 = por %p224, %p225
      %p227 = scmp.ne.s32.totalorder %s218, %s219
      %p228 = scmp.eq.s32.totalorder %s28, 0
      %p229 = por %p227, %p228
      %p230 = scmp.ne.s32.totalorder %s218, %s219
      %p231 = scmp.eq.s32.totalorder %s29, 3
      %p232 = por %p230, %p231
      %p234 = scmp.ne.s32.totalorder %s219, %s233
      %p235 = scmp.eq.s32.totalorder %s29, 0
      %p236 = por %p234, %p235
      %s238 = sadd.s32 %s237, 1
      %p241 = scmp.eq.s32.totalorder %s23, 3
      %p242 = scmp.ne.s32.totalorder %s237, %s239
      %p243 = scmp.eq.s32.totalorder %s23, 0
      %p244 = por %p242, %p243
      %p245 = scmp.ne.s32.totalorder %s237, %s239
      %p246 = scmp.eq.s32.totalorder %s28, 3
      %p247 = por %p245, %p246
      %p248 = scmp.ne.s32.totalorder %s239, %s240
      %p249 = scmp.eq.s32.totalorder %s28, 0
      %p250 = por %p248, %p249
      %p251 = scmp.ne.s32.totalorder %s239, %s240
      %p252 = scmp.eq.s32.totalorder %s29, 3
      %p253 = por %p251, %p252
      %p255 = scmp.ne.s32.totalorder %s240, %s254
      %p256 = scmp.eq.s32.totalorder %s29, 0
      %p257 = por %p255, %p256
      %s258 = ssub.s32 %s30, %s42
      %p259 = scmp.eq.s32.totalorder %s258, 0
      %s261 = sadd.s32 %s260, 1
      %s262 = scalar_select %p259, %s260, %s261
      %p265 = pneg %p259
      %p266 = scmp.eq.s32.totalorder %s23, 3
      %p267 = por %p265, %p266
      %p268 = scmp.ne.s32.totalorder %s260, %s263
      %p269 = scmp.eq.s32.totalorder %s23, 0
      %p270 = por %p268, %p269
      %p271 = scmp.ne.s32.totalorder %s260, %s263
      %p272 = scmp.eq.s32.totalorder %s28, 3
      %p273 = por %p271, %p272
      %p274 = scmp.ne.s32.totalorder %s263, %s264
      %p275 = scmp.eq.s32.totalorder %s28, 0
      %p276 = por %p274, %p275
      %p277 = scmp.ne.s32.totalorder %s263, %s264
      %p278 = scmp.eq.s32.totalorder %s29, 3
      %p279 = por %p277, %p278
      %p281 = scmp.ne.s32.totalorder %s264, %s280
      %p282 = scmp.eq.s32.totalorder %s29, 0
      %p283 = por %p281, %p282
      %p284 = scmp.le.s32.totalorder 1, %s23
      %p285 = scmp.lt.s32.totalorder %s23, 5
      %p286 = pnand %p284, %p285
      %p287 = pneg %p286
      // Predicated region
      $region9: #{tpu_custom_call.1} parent=5 // pred_check
        _
      $region10: #{tpu_custom_call.1} parent=5 // pred_check_branch
        %289 = sbr.rel (%p286) target = $region12
      $region11: #{tpu_custom_call.1} parent=5 // pred_region
        %s290 = ssub.s32 %s23, 1
        // Predicated region
        $region13: #{tpu_custom_call.1} parent=11 // pred_check
          %p291 = pneg %p82
        $region14: #{tpu_custom_call.1} parent=11 // pred_check_branch
          %293 = sbr.rel (%p291) target = $region16
        $region15: #{tpu_custom_call.1} parent=11 // pred_region
          %s295 = ssub.s32 128, 128
          %296 = vsyncadd [#allocation7], %s295
          %s298 = sshll.u32 [#allocation6], 4
          %s299 = int_to_ptr.vmem [resolvable:$true] %s298
          %301 = dma.hbm_to_vmem [thread:$0]  %s1, 128, %s299, [#allocation7]
        $region16: #{tpu_custom_call.1} parent=11 // pred_fallthru
          _
        // Predicated region
        $region17: #{tpu_custom_call.1} parent=11 // pred_check
          %p302 = pneg %p103
        $region18: #{tpu_custom_call.1} parent=11 // pred_check_branch
          %304 = sbr.rel (%p302) target = $region20
        $region19: #{tpu_custom_call.1} parent=11 // pred_region
          _
        $region20: #{tpu_custom_call.1} parent=11 // pred_fallthru
          _
        // Predicated region
        $region21: #{tpu_custom_call.1} parent=11 // pred_check
          %p305 = pneg %p124
        $region22: #{tpu_custom_call.1} parent=11 // pred_check_branch
          %307 = sbr.rel (%p305) target = $region24
        $region23: #{tpu_custom_call.1} parent=11 // pred_region
          _
        $region24: #{tpu_custom_call.1} parent=11 // pred_fallthru
          _
        // Predicated region
        $region25: #{tpu_custom_call.1} parent=11 // pred_check
          %p308 = pneg %p145
        $region26: #{tpu_custom_call.1} parent=11 // pred_check_branch
          %310 = sbr.rel (%p308) target = $region28
        $region27: #{tpu_custom_call.1} parent=11 // pred_region
          _
        $region28: #{tpu_custom_call.1} parent=11 // pred_fallthru
          _
        // Predicated region
        $region29: #{tpu_custom_call.1} parent=11 // pred_check
          %p311 = pneg %p166
        $region30: #{tpu_custom_call.1} parent=11 // pred_check_branch
          %313 = sbr.rel (%p311) target = $region32
        $region31: #{tpu_custom_call.1} parent=11 // pred_region
          _
        $region32: #{tpu_custom_call.1} parent=11 // pred_fallthru
          _
        // Predicated region
        $region33: #{tpu_custom_call.1} parent=11 // pred_check
          %p314 = pneg %p187
        $region34: #{tpu_custom_call.1} parent=11 // pred_check_branch
          %316 = sbr.rel (%p314) target = $region36
        $region35: #{tpu_custom_call.1} parent=11 // pred_region
          %s318 = ssub.s32 512, 512
          %319 = vsyncadd [#allocation7], %s318
          %s320 = sshll.u32 [#allocation8], 4
          %s321 = int_to_ptr.vmem [resolvable:$true] %s320
          %326 = dma.hbm_to_vmem [thread:$0]  %s6, 512, %s321, [#allocation7], 64, 64, 4
        $region36: #{tpu_custom_call.1} parent=11 // pred_fallthru
          _
        // Predicated region
        $region37: #{tpu_custom_call.1} parent=11 // pred_check
          %p327 = pneg %p208
        $region38: #{tpu_custom_call.1} parent=11 // pred_check_branch
          %329 = sbr.rel (%p327) target = $region40
        $region39: #{tpu_custom_call.1} parent=11 // pred_region
          _
        $region40: #{tpu_custom_call.1} parent=11 // pred_fallthru
          _
        // Predicated region
        $region41: #{tpu_custom_call.1} parent=11 // pred_check
          %p330 = pneg %p229
        $region42: #{tpu_custom_call.1} parent=11 // pred_check_branch
          %332 = sbr.rel (%p330) target = $region44
        $region43: #{tpu_custom_call.1} parent=11 // pred_region
          _
        $region44: #{tpu_custom_call.1} parent=11 // pred_fallthru
          _
        // Predicated region
        $region45: #{tpu_custom_call.1} parent=11 // pred_check
          %p333 = pneg %p250
        $region46: #{tpu_custom_call.1} parent=11 // pred_check_branch
          %335 = sbr.rel (%p333) target = $region48
        $region47: #{tpu_custom_call.1} parent=11 // pred_region
          _
        $region48: #{tpu_custom_call.1} parent=11 // pred_fallthru
          _
      $region12: #{tpu_custom_call.1} parent=5 // pred_fallthru
        _
      %p336 = scmp.lt.s32.totalorder %s23, 4
      // Predicated region
      $region49: #{tpu_custom_call.1} parent=5 // pred_check
        %p337 = pneg %p336
      $region50: #{tpu_custom_call.1} parent=5 // pred_check_branch
        %339 = sbr.rel (%p337) target = $region52
      $region51: #{tpu_custom_call.1} parent=5 // pred_region
        // Predicated region
        $region53: #{tpu_custom_call.1} parent=51 // pred_check
          %p340 = pneg %p55
        $region54: #{tpu_custom_call.1} parent=51 // pred_check_branch
          %342 = sbr.rel (%p340) target = $region56
        $region55: #{tpu_custom_call.1} parent=51 // pred_region
          %s343 = sand.u32 %s45, 1
          %s344 = scalar_lea.sflag [#allocation4], %s343
          %s345 = sand.u32 %s45, 1
          %s346 = smul.addr %s345, 8
          %s347 = scalar_lea.vmem [#allocation3], %s346
          %s349 = ssub.s32 128, 128
          %350 = vsyncadd %s344, %s349
          %s351 = smul.addr %s30, 128
          %s352 = scalar_lea.hbm %s0, %s351
          %s354 = sshll.u32 %s347, 4
          %s355 = int_to_ptr.vmem [resolvable:$true] %s354
          %357 = dma.hbm_to_vmem [thread:$0]  %s352, 128, %s355, %s344
        $region56: #{tpu_custom_call.1} parent=51 // pred_fallthru
          _
      $region52: #{tpu_custom_call.1} parent=5 // pred_fallthru
        _
      %p358 = scmp.le.s32.totalorder 1, %s23
      %p359 = scmp.lt.s32.totalorder %s23, 5
      %p360 = pnand %p358, %p359
      %p361 = pneg %p360
      // Predicated region
      $region57: #{tpu_custom_call.1} parent=5 // pred_check
        _
      $region58: #{tpu_custom_call.1} parent=5 // pred_check_branch
        %363 = sbr.rel (%p360) target = $region60
      $region59: #{tpu_custom_call.1} parent=5 // pred_region
        %s364 = ssub.s32 %s23, 1
        %s365 = sand.u32 %s48, 1
        %s366 = scalar_lea.sflag [#allocation4], %s365
        %s367 = sand.u32 %s48, 1
        %s368 = smul.addr %s367, 8
        %s369 = scalar_lea.vmem [#allocation3], %s368
        // Predicated region
        $region61: #{tpu_custom_call.1} parent=59 // pred_check
          %p370 = pneg %p61
        $region62: #{tpu_custom_call.1} parent=59 // pred_check_branch
          %372 = sbr.rel (%p370) target = $region64
        $region63: #{tpu_custom_call.1} parent=59 // pred_region
          %373 = dma.done %s366, 128
        $region64: #{tpu_custom_call.1} parent=59 // pred_fallthru
          _
        // Predicated region
        $region65: #{tpu_custom_call.1} parent=59 // pred_check
          %p374 = pneg %p82
        $region66: #{tpu_custom_call.1} parent=59 // pred_check_branch
          %376 = sbr.rel (%p374) target = $region68
        $region67: #{tpu_custom_call.1} parent=59 // pred_region
          %377 = dma.done [#allocation7], 128
        $region68: #{tpu_custom_call.1} parent=59 // pred_fallthru
          _
        // Predicated region
        $region69: #{tpu_custom_call.1} parent=59 // pred_check
          %p378 = pneg %p187
        $region70: #{tpu_custom_call.1} parent=59 // pred_check_branch
          %380 = sbr.rel (%p378) target = $region72
        $region71: #{tpu_custom_call.1} parent=59 // pred_region
          %381 = dma.done [#allocation7], 512
        $region72: #{tpu_custom_call.1} parent=59 // pred_fallthru
          _
        %s382 = sand.u32 %s48, 1
        %s383 = scalar_lea.sflag [#allocation4], %s382
        %s384 = sand.u32 %s48, 1
        %s385 = smul.addr %s384, 8
        %s386 = scalar_lea.vmem [#allocation3], %s385
        %p387 = pneg %p61
        %p388 = pneg %p58
        %p389 = pneg %p82
        %p390 = pneg %p79
        %p391 = pneg %p103
        %p392 = pneg %p100
        %p393 = pneg %p124
        %p394 = pneg %p121
        %p395 = pneg %p145
        %p396 = pneg %p142
        %p397 = pneg %p166
        %p398 = pneg %p163
        %p399 = pneg %p187
        %p400 = pneg %p184
        %p401 = pneg %p208
        %p402 = pneg %p205
        %p403 = pneg %p229
        %p404 = pneg %p226
        %p405 = pneg %p250
        %p406 = pneg %p247
        %p407 = pneg %p276
        %p408 = pneg %p273
        %s409 = sand.u32 %s263, 1
        %s410 = scalar_lea.sflag [#allocation5], %s409
        %s411 = sand.u32 %s263, 1
        %s412 = smul.addr %s411, 8
        %s413 = scalar_lea.vmem [#allocation9], %s412
        %p415 = scmp.eq.s32.totalorder %s33, 0
        // Predicated region
        $region73: #{tpu_custom_call.1} parent=59 // pred_check
          %p416 = pneg %p415
        $region74: #{tpu_custom_call.1} parent=59 // pred_check_branch
          %418 = sbr.rel (%p416) target = $region76
        $region75: #{tpu_custom_call.1} parent=59 // pred_region
          %v419 = vld [vmem:[%s369] sm:$0xff]
          %v420 = vld [vmem:[#allocation6] sm:$0xff]
          %v421 = vadd.f32 %v419, %v420
          %vm422 = vcmask 261120
          %423 = vst.msk [vmem:[#allocation2] sm:$0xff] %vm422, %v421
        $region76: #{tpu_custom_call.1} parent=59 // pred_fallthru
          _
        %v424 = vld [vmem:[#allocation2] sm:$0xff]
        %s425 = smul.u32 %s33, 16
        %s426 = scalar_lea.vmem %s8, %s425
        %v427 = vld [vmem:[%s426] sm:$0xff]
        %v428 = vld [vmem:[%s426 + $0x8] sm:$0x3]
        %v429 = vpack.c.bf16 %v424, %v424
        %s430 = smul.u32 %s33, 4
        %s431 = smul.addr %s430, 4
        %s432 = scalar_lea.vmem %s2, %s431
        %v433 = vld [vmem:[%s432] sm:$0xf]
        %v434 = vld [vmem:[%s432 + $0x4] sm:$0xf]
        %v435 = vld [vmem:[%s432 + $0x8] sm:$0xf]
        %v436 = vld [vmem:[%s432 + $0xc] sm:$0xf]
        %v437 = vlaneseq
        %v438 = vshrl.u32 %v437, 7
        %v439 = vsub.s32 0, %v438
        %v440 = vrot.slane %v427, %v439
        %v445 = vunpack.c.l.b16 %v433
        %v446 = vunpack.c.l.b16 %v434
        %v447 = vunpack.c.l.b16 %v435
        %v448 = vunpack.c.l.b16 %v436
        %v449 = vpack.c.b16 %v446, %v445
        %v450 = vpack.c.b16 %v448, %v447
        %vm453 = vcmask 261120
        %v455 = vsel %vm453, %v429, 0
        %457 = vmatprep.subr.bf16.mxu0 0
        %458 = vmatpush1.bf16.msra.mxu0 %v449
        %459 = vmatprep.subr.bf16.mxu0 0
        %460 = vmatpush1.bf16.msra.mxu0 %v450
        %461 = vmatprep.subr.bf16.mxu0 0
        %462 = vmatpush1.bf16.msra.mxu0 0
        %463 = vmatprep.subr.bf16.mxu0 0
        %464 = vmatpush1.bf16.msra.mxu0 0
        %465 = vmatprep.subr.bf16.mxu0 0
        %466 = vmatpush1.bf16.msra.mxu0 0
        %467 = vmatprep.subr.bf16.mxu0 0
        %468 = vmatpush1.bf16.msra.mxu0 0
        %469 = vmatprep.subr.bf16.mxu0 0
        %470 = vmatpush1.bf16.msra.mxu0 0
        %471 = vmatprep.subr.bf16.mxu0 0
        %472 = vmatpush1.bf16.msra.mxu0 0
        %473 = vmatprep.subr.bf16.mxu0 0
        %474 = vmatpush1.bf16.msra.mxu0 0
        %475 = vmatprep.subr.bf16.mxu0 0
        %476 = vmatpush1.bf16.msra.mxu0 0
        %477 = vmatprep.subr.bf16.mxu0 0
        %478 = vmatpush1.bf16.msra.mxu0 0
        %479 = vmatprep.subr.bf16.mxu0 0
        %480 = vmatpush1.bf16.msra.mxu0 0
        %481 = vmatprep.subr.bf16.mxu0 0
        %482 = vmatpush1.bf16.msra.mxu0 0
        %483 = vmatprep.subr.bf16.mxu0 0
        %484 = vmatpush1.bf16.msra.mxu0 0
        %485 = vmatprep.subr.bf16.mxu0 0
        %486 = vmatpush1.bf16.msra.mxu0 0
        %487 = vmatprep.subr.bf16.mxu0 0
        %488 = vmatpush1.bf16.msra.mxu0 0
        %489 = vmatprep.mubr.bf16.mxu0 0
        %490 = vmatmul.mubr.bf16.gmra.mrb[0].mxu0 %v455
        %v491 = vpop.f32.mrb[0].mxu0
        %v492 = vadd.f32 %v440, %v491
        %v493 = vpop.f32.mrb[0].mxu0
        %v494 = vpop.f32.mrb[0].mxu0
        %v495 = vpop.f32.mrb[0].mxu0
        %496 = vdwg.mxu0
        %s497 = smul.addr %s430, 4
        %s498 = scalar_lea.vmem %s3, %s497
        %v499 = vld [vmem:[%s498] sm:$0xf]
        %v500 = vld [vmem:[%s498 + $0x4] sm:$0xf]
        %v501 = vld [vmem:[%s498 + $0x8] sm:$0xf]
        %v502 = vld [vmem:[%s498 + $0xc] sm:$0xf]
        %v503 = vlaneseq
        %v504 = vshrl.u32 %v503, 7
        %v505 = vsub.s32 1, %v504
        %v506 = vrot.slane %v427, %v505
        %v511 = vunpack.c.l.b16 %v499
        %v512 = vunpack.c.l.b16 %v500
        %v513 = vunpack.c.l.b16 %v501
        %v514 = vunpack.c.l.b16 %v502
        %v515 = vpack.c.b16 %v512, %v511
        %v516 = vpack.c.b16 %v514, %v513
        %519 = vmatprep.subr.bf16.mxu0 0
        %520 = vmatpush1.bf16.msra.mxu0 %v515
        %521 = vmatprep.subr.bf16.mxu0 0
        %522 = vmatpush1.bf16.msra.mxu0 %v516
        %523 = vmatprep.subr.bf16.mxu0 0
        %524 = vmatpush1.bf16.msra.mxu0 0
        %525 = vmatprep.subr.bf16.mxu0 0
        %526 = vmatpush1.bf16.msra.mxu0 0
        %527 = vmatprep.subr.bf16.mxu0 0
        %528 = vmatpush1.bf16.msra.mxu0 0
        %529 = vmatprep.subr.bf16.mxu0 0
        %530 = vmatpush1.bf16.msra.mxu0 0
        %531 = vmatprep.subr.bf16.mxu0 0
        %532 = vmatpush1.bf16.msra.mxu0 0
        %533 = vmatprep.subr.bf16.mxu0 0
        %534 = vmatpush1.bf16.msra.mxu0 0
        %535 = vmatprep.subr.bf16.mxu0 0
        %536 = vmatpush1.bf16.msra.mxu0 0
        %537 = vmatprep.subr.bf16.mxu0 0
        %538 = vmatpush1.bf16.msra.mxu0 0
        %539 = vmatprep.subr.bf16.mxu0 0
        %540 = vmatpush1.bf16.msra.mxu0 0
        %541 = vmatprep.subr.bf16.mxu0 0
        %542 = vmatpush1.bf16.msra.mxu0 0
        %543 = vmatprep.subr.bf16.mxu0 0
        %544 = vmatpush1.bf16.msra.mxu0 0
        %545 = vmatprep.subr.bf16.mxu0 0
        %546 = vmatpush1.bf16.msra.mxu0 0
        %547 = vmatprep.subr.bf16.mxu0 0
        %548 = vmatpush1.bf16.msra.mxu0 0
        %549 = vmatprep.subr.bf16.mxu0 0
        %550 = vmatpush1.bf16.msra.mxu0 0
        %551 = vmatprep.mubr.bf16.mxu0 0
        %552 = vmatmul.mubr.bf16.gmra.mrb[0].mxu0 %v455
        %v553 = vpop.f32.mrb[0].mxu0
        %v554 = vadd.f32 %v506, %v553
        %v555 = vpop.f32.mrb[0].mxu0
        %v556 = vpop.f32.mrb[0].mxu0
        %v557 = vpop.f32.mrb[0].mxu0
        %558 = vdwg.mxu0
        %s559 = smul.addr %s430, 4
        %s560 = scalar_lea.vmem %s4, %s559
        %v561 = vld [vmem:[%s560] sm:$0xf]
        %v562 = vld [vmem:[%s560 + $0x4] sm:$0xf]
        %v563 = vld [vmem:[%s560 + $0x8] sm:$0xf]
        %v564 = vld [vmem:[%s560 + $0xc] sm:$0xf]
        %v565 = vlaneseq
        %v566 = vshrl.u32 %v565, 7
        %v567 = vsub.s32 2, %v566
        %v568 = vrot.slane %v427, %v567
        %v573 = vunpack.c.l.b16 %v561
        %v574 = vunpack.c.l.b16 %v562
        %v575 = vunpack.c.l.b16 %v563
        %v576 = vunpack.c.l.b16 %v564
        %v577 = vpack.c.b16 %v574, %v573
        %v578 = vpack.c.b16 %v576, %v575
        %581 = vmatprep.subr.bf16.mxu0 0
        %582 = vmatpush1.bf16.msra.mxu0 %v577
        %583 = vmatprep.subr.bf16.mxu0 0
        %584 = vmatpush1.bf16.msra.mxu0 %v578
        %585 = vmatprep.subr.bf16.mxu0 0
        %586 = vmatpush1.bf16.msra.mxu0 0
        %587 = vmatprep.subr.bf16.mxu0 0
        %588 = vmatpush1.bf16.msra.mxu0 0
        %589 = vmatprep.subr.bf16.mxu0 0
        %590 = vmatpush1.bf16.msra.mxu0 0
        %591 = vmatprep.subr.bf16.mxu0 0
        %592 = vmatpush1.bf16.msra.mxu0 0
        %593 = vmatprep.subr.bf16.mxu0 0
        %594 = vmatpush1.bf16.msra.mxu0 0
        %595 = vmatprep.subr.bf16.mxu0 0
        %596 = vmatpush1.bf16.msra.mxu0 0
        %597 = vmatprep.subr.bf16.mxu0 0
        %598 = vmatpush1.bf16.msra.mxu0 0
        %599 = vmatprep.subr.bf16.mxu0 0
        %600 = vmatpush1.bf16.msra.mxu0 0
        %601 = vmatprep.subr.bf16.mxu0 0
        %602 = vmatpush1.bf16.msra.mxu0 0
        %603 = vmatprep.subr.bf16.mxu0 0
        %604 = vmatpush1.bf16.msra.mxu0 0
        %605 = vmatprep.subr.bf16.mxu0 0
        %606 = vmatpush1.bf16.msra.mxu0 0
        %607 = vmatprep.subr.bf16.mxu0 0
        %608 = vmatpush1.bf16.msra.mxu0 0
        %609 = vmatprep.subr.bf16.mxu0 0
        %610 = vmatpush1.bf16.msra.mxu0 0
        %611 = vmatprep.subr.bf16.mxu0 0
        %612 = vmatpush1.bf16.msra.mxu0 0
        %613 = vmatprep.mubr.bf16.mxu0 0
        %614 = vmatmul.mubr.bf16.gmra.mrb[0].mxu0 %v455
        %v615 = vpop.f32.mrb[0].mxu0
        %v616 = vadd.f32 %v568, %v615
        %v617 = vpop.f32.mrb[0].mxu0
        %v618 = vpop.f32.mrb[0].mxu0
        %v619 = vpop.f32.mrb[0].mxu0
        %620 = vdwg.mxu0
        %v621 = vpack.c.bf16 %v492, %v492
        %623 = vrot.lane.b32.xlu0 %v621, 120
        %v624 = vpop.permute.xlu0 %623
        %625 = vrot.lane.b32.xlu0 %v621, 112
        %v626 = vpop.permute.xlu0 %625
        %627 = vrot.lane.b32.xlu0 %v621, 104
        %v628 = vpop.permute.xlu0 %627
        %v630 = vunpack.c.l.s4 1983009808
        %v631 = vunpack.c.0.s8 %v630
        %v632 = vlaneseq
        %v633 = vshrl.u32 %v632, 7
        %v634 = vsub.s32 %v631, %v633
        %v635 = vrot.slane %v621, %v634
        %v638 = vunpack.c.l.s4 1983009808
        %v639 = vunpack.c.0.s8 %v638
        %v640 = vlaneseq
        %v641 = vshrl.u32 %v640, 7
        %v642 = vsub.s32 %v639, %v641
        %v643 = vrot.slane %v626, %v642
        %v644 = vcombine.low %v635, %v643
        %v645 = vcombine.high %v635, %v643
        %v647 = vunpack.c.l.s4 1934713408
        %v648 = vunpack.c.0.s8 %v647
        %v649 = vlaneseq
        %v650 = vshrl.u32 %v649, 7
        %v651 = vsub.s32 %v648, %v650
        %v652 = vrot.slane %v644, %v651
        %v654 = vunpack.c.l.s4 1934713408
        %v655 = vunpack.c.0.s8 %v654
        %v656 = vlaneseq
        %v657 = vshrl.u32 %v656, 7
        %v658 = vsub.s32 %v655, %v657
        %v659 = vrot.slane %v645, %v658
        %v660 = vcombine.high %v652, 0
        %v661 = vcombine.high %v659, 0
        %v664 = vunpack.c.l.s4 1983009808
        %v665 = vunpack.c.0.s8 %v664
        %v666 = vlaneseq
        %v667 = vshrl.u32 %v666, 7
        %v668 = vsub.s32 %v665, %v667
        %v669 = vrot.slane %v624, %v668
        %v672 = vunpack.c.l.s4 1983009808
        %v673 = vunpack.c.0.s8 %v672
        %v674 = vlaneseq
        %v675 = vshrl.u32 %v674, 7
        %v676 = vsub.s32 %v673, %v675
        %v677 = vrot.slane %v628, %v676
        %v678 = vcombine.low %v669, %v677
        %v679 = vcombine.high %v669, %v677
        %v681 = vunpack.c.l.s4 1934713408
        %v682 = vunpack.c.0.s8 %v681
        %v683 = vlaneseq
        %v684 = vshrl.u32 %v683, 7
        %v685 = vsub.s32 %v682, %v684
        %v686 = vrot.slane %v678, %v685
        %v688 = vunpack.c.l.s4 1934713408
        %v689 = vunpack.c.0.s8 %v688
        %v690 = vlaneseq
        %v691 = vshrl.u32 %v690, 7
        %v692 = vsub.s32 %v689, %v691
        %v693 = vrot.slane %v679, %v692
        %v694 = vcombine.high %v686, 0
        %v695 = vcombine.high %v693, 0
        %v698 = vpack.i.b16 %v686, %v652
        %v700 = vshrl.u32 %v652, 16
        %v701 = vshrl.u32 %v686, 16
        %v702 = vpack.i.b16 %v701, %v700
        %v706 = vpack.i.b16 %v694, %v660
        %v708 = vshrl.u32 %v660, 16
        %v709 = vshrl.u32 %v694, 16
        %v710 = vpack.i.b16 %v709, %v708
        %v714 = vpack.i.b16 %v693, %v659
        %v716 = vshrl.u32 %v659, 16
        %v717 = vshrl.u32 %v693, 16
        %v718 = vpack.i.b16 %v717, %v716
        %v722 = vpack.i.b16 %v695, %v661
        %v724 = vshrl.u32 %v661, 16
        %v725 = vshrl.u32 %v695, 16
        %v726 = vpack.i.b16 %v725, %v724
        %v728 = vcombine.low %v698, %v714
        %v730 = vunpack.c.l.s4 1983009808
        %v731 = vunpack.c.0.s8 %v730
        %v732 = vlaneseq
        %v733 = vshrl.u32 %v732, 7
        %v734 = vsub.s32 %v731, %v733
        %v735 = vrot.slane %v728, %v734
        %v736 = vcombine.low %v706, %v722
        %v738 = vunpack.c.l.s4 1983009808
        %v739 = vunpack.c.0.s8 %v738
        %v740 = vlaneseq
        %v741 = vshrl.u32 %v740, 7
        %v742 = vsub.s32 %v739, %v741
        %v743 = vrot.slane %v736, %v742
        %v744 = vcombine.low %v735, %v743
        %v746 = vunpack.c.l.s4 1934713408
        %v747 = vunpack.c.0.s8 %v746
        %v748 = vlaneseq
        %v749 = vshrl.u32 %v748, 7
        %v750 = vsub.s32 %v747, %v749
        %v751 = vrot.slane %v744, %v750
        %v752 = vcombine.high %v751, 0
        %v753 = vcombine.low %v702, %v718
        %v755 = vunpack.c.l.s4 1983009808
        %v756 = vunpack.c.0.s8 %v755
        %v757 = vlaneseq
        %v758 = vshrl.u32 %v757, 7
        %v759 = vsub.s32 %v756, %v758
        %v760 = vrot.slane %v753, %v759
        %v761 = vcombine.low %v710, %v726
        %v763 = vunpack.c.l.s4 1983009808
        %v764 = vunpack.c.0.s8 %v763
        %v765 = vlaneseq
        %v766 = vshrl.u32 %v765, 7
        %v767 = vsub.s32 %v764, %v766
        %v768 = vrot.slane %v761, %v767
        %v769 = vcombine.low %v760, %v768
        %v771 = vunpack.c.l.s4 1934713408
        %v772 = vunpack.c.0.s8 %v771
        %v773 = vlaneseq
        %v774 = vshrl.u32 %v773, 7
        %v775 = vsub.s32 %v772, %v774
        %v776 = vrot.slane %v769, %v775
        %v777 = vcombine.high %v776, 0
        %v780 = vpack.i.b16 %v776, %v751
        %v781 = vshrl.u32 %v751, 16
        %v782 = vshrl.u32 %v776, 16
        %v783 = vpack.i.b16 %v782, %v781
        %v786 = vpack.i.b16 %v777, %v752
        %v787 = vshrl.u32 %v752, 16
        %v788 = vshrl.u32 %v777, 16
        %v789 = vpack.i.b16 %v788, %v787
        %v790 = vpack.c.bf16 %v554, %v554
        %792 = vrot.lane.b32.xlu0 %v790, 120
        %v793 = vpop.permute.xlu0 %792
        %794 = vrot.lane.b32.xlu0 %v790, 112
        %v795 = vpop.permute.xlu0 %794
        %796 = vrot.lane.b32.xlu0 %v790, 104
        %v797 = vpop.permute.xlu0 %796
        %v799 = vunpack.c.l.s4 1983009808
        %v800 = vunpack.c.0.s8 %v799
        %v801 = vlaneseq
        %v802 = vshrl.u32 %v801, 7
        %v803 = vsub.s32 %v800, %v802
        %v804 = vrot.slane %v790, %v803
        %v807 = vunpack.c.l.s4 1983009808
        %v808 = vunpack.c.0.s8 %v807
        %v809 = vlaneseq
        %v810 = vshrl.u32 %v809, 7
        %v811 = vsub.s32 %v808, %v810
        %v812 = vrot.slane %v795, %v811
        %v813 = vcombine.low %v804, %v812
        %v814 = vcombine.high %v804, %v812
        %v816 = vunpack.c.l.s4 1934713408
        %v817 = vunpack.c.0.s8 %v816
        %v818 = vlaneseq
        %v819 = vshrl.u32 %v818, 7
        %v820 = vsub.s32 %v817, %v819
        %v821 = vrot.slane %v813, %v820
        %v823 = vunpack.c.l.s4 1934713408
        %v824 = vunpack.c.0.s8 %v823
        %v825 = vlaneseq
        %v826 = vshrl.u32 %v825, 7
        %v827 = vsub.s32 %v824, %v826
        %v828 = vrot.slane %v814, %v827
        %v829 = vcombine.high %v821, 0
        %v830 = vcombine.high %v828, 0
        %v833 = vunpack.c.l.s4 1983009808
        %v834 = vunpack.c.0.s8 %v833
        %v835 = vlaneseq
        %v836 = vshrl.u32 %v835, 7
        %v837 = vsub.s32 %v834, %v836
        %v838 = vrot.slane %v793, %v837
        %v841 = vunpack.c.l.s4 1983009808
        %v842 = vunpack.c.0.s8 %v841
        %v843 = vlaneseq
        %v844 = vshrl.u32 %v843, 7
        %v845 = vsub.s32 %v842, %v844
        %v846 = vrot.slane %v797, %v845
        %v847 = vcombine.low %v838, %v846
        %v848 = vcombine.high %v838, %v846
        %v850 = vunpack.c.l.s4 1934713408
        %v851 = vunpack.c.0.s8 %v850
        %v852 = vlaneseq
        %v853 = vshrl.u32 %v852, 7
        %v854 = vsub.s32 %v851, %v853
        %v855 = vrot.slane %v847, %v854
        %v857 = vunpack.c.l.s4 1934713408
        %v858 = vunpack.c.0.s8 %v857
        %v859 = vlaneseq
        %v860 = vshrl.u32 %v859, 7
        %v861 = vsub.s32 %v858, %v860
        %v862 = vrot.slane %v848, %v861
        %v863 = vcombine.high %v855, 0
        %v864 = vcombine.high %v862, 0
        %v867 = vpack.i.b16 %v855, %v821
        %v869 = vshrl.u32 %v821, 16
        %v870 = vshrl.u32 %v855, 16
        %v871 = vpack.i.b16 %v870, %v869
        %v875 = vpack.i.b16 %v863, %v829
        %v877 = vshrl.u32 %v829, 16
        %v878 = vshrl.u32 %v863, 16
        %v879 = vpack.i.b16 %v878, %v877
        %v883 = vpack.i.b16 %v862, %v828
        %v885 = vshrl.u32 %v828, 16
        %v886 = vshrl.u32 %v862, 16
        %v887 = vpack.i.b16 %v886, %v885
        %v891 = vpack.i.b16 %v864, %v830
        %v893 = vshrl.u32 %v830, 16
        %v894 = vshrl.u32 %v864, 16
        %v895 = vpack.i.b16 %v894, %v893
        %v897 = vcombine.low %v867, %v883
        %v899 = vunpack.c.l.s4 1983009808
        %v900 = vunpack.c.0.s8 %v899
        %v901 = vlaneseq
        %v902 = vshrl.u32 %v901, 7
        %v903 = vsub.s32 %v900, %v902
        %v904 = vrot.slane %v897, %v903
        %v905 = vcombine.low %v875, %v891
        %v907 = vunpack.c.l.s4 1983009808
        %v908 = vunpack.c.0.s8 %v907
        %v909 = vlaneseq
        %v910 = vshrl.u32 %v909, 7
        %v911 = vsub.s32 %v908, %v910
        %v912 = vrot.slane %v905, %v911
        %v913 = vcombine.low %v904, %v912
        %v915 = vunpack.c.l.s4 1934713408
        %v916 = vunpack.c.0.s8 %v915
        %v917 = vlaneseq
        %v918 = vshrl.u32 %v917, 7
        %v919 = vsub.s32 %v916, %v918
        %v920 = vrot.slane %v913, %v919
        %v921 = vcombine.high %v920, 0
        %v922 = vcombine.low %v871, %v887
        %v924 = vunpack.c.l.s4 1983009808
        %v925 = vunpack.c.0.s8 %v924
        %v926 = vlaneseq
        %v927 = vshrl.u32 %v926, 7
        %v928 = vsub.s32 %v925, %v927
        %v929 = vrot.slane %v922, %v928
        %v930 = vcombine.low %v879, %v895
        %v932 = vunpack.c.l.s4 1983009808
        %v933 = vunpack.c.0.s8 %v932
        %v934 = vlaneseq
        %v935 = vshrl.u32 %v934, 7
        %v936 = vsub.s32 %v933, %v935
        %v937 = vrot.slane %v930, %v936
        %v938 = vcombine.low %v929, %v937
        %v940 = vunpack.c.l.s4 1934713408
        %v941 = vunpack.c.0.s8 %v940
        %v942 = vlaneseq
        %v943 = vshrl.u32 %v942, 7
        %v944 = vsub.s32 %v941, %v943
        %v945 = vrot.slane %v938, %v944
        %v946 = vcombine.high %v945, 0
        %v949 = vpack.i.b16 %v945, %v920
        %v950 = vshrl.u32 %v920, 16
        %v951 = vshrl.u32 %v945, 16
        %v952 = vpack.i.b16 %v951, %v950
        %v955 = vpack.i.b16 %v946, %v921
        %v956 = vshrl.u32 %v921, 16
        %v957 = vshrl.u32 %v946, 16
        %v958 = vpack.i.b16 %v957, %v956
        %v959 = vpack.c.bf16 %v616, %v616
        %961 = vrot.lane.b32.xlu0 %v959, 120
        %v962 = vpop.permute.xlu0 %961
        %963 = vrot.lane.b32.xlu0 %v959, 112
        %v964 = vpop.permute.xlu0 %963
        %965 = vrot.lane.b32.xlu0 %v959, 104
        %v966 = vpop.permute.xlu0 %965
        %v968 = vunpack.c.l.s4 1983009808
        %v969 = vunpack.c.0.s8 %v968
        %v970 = vlaneseq
        %v971 = vshrl.u32 %v970, 7
        %v972 = vsub.s32 %v969, %v971
        %v973 = vrot.slane %v959, %v972
        %v976 = vunpack.c.l.s4 1983009808
        %v977 = vunpack.c.0.s8 %v976
        %v978 = vlaneseq
        %v979 = vshrl.u32 %v978, 7
        %v980 = vsub.s32 %v977, %v979
        %v981 = vrot.slane %v964, %v980
        %v982 = vcombine.low %v973, %v981
        %v983 = vcombine.high %v973, %v981
        %v985 = vunpack.c.l.s4 1934713408
        %v986 = vunpack.c.0.s8 %v985
        %v987 = vlaneseq
        %v988 = vshrl.u32 %v987, 7
        %v989 = vsub.s32 %v986, %v988
        %v990 = vrot.slane %v982, %v989
        %v992 = vunpack.c.l.s4 1934713408
        %v993 = vunpack.c.0.s8 %v992
        %v994 = vlaneseq
        %v995 = vshrl.u32 %v994, 7
        %v996 = vsub.s32 %v993, %v995
        %v997 = vrot.slane %v983, %v996
        %v998 = vcombine.high %v990, 0
        %v999 = vcombine.high %v997, 0
        %v1002 = vunpack.c.l.s4 1983009808
        %v1003 = vunpack.c.0.s8 %v1002
        %v1004 = vlaneseq
        %v1005 = vshrl.u32 %v1004, 7
        %v1006 = vsub.s32 %v1003, %v1005
        %v1007 = vrot.slane %v962, %v1006
        %v1010 = vunpack.c.l.s4 1983009808
        %v1011 = vunpack.c.0.s8 %v1010
        %v1012 = vlaneseq
        %v1013 = vshrl.u32 %v1012, 7
        %v1014 = vsub.s32 %v1011, %v1013
        %v1015 = vrot.slane %v966, %v1014
        %v1016 = vcombine.low %v1007, %v1015
        %v1017 = vcombine.high %v1007, %v1015
        %v1019 = vunpack.c.l.s4 1934713408
        %v1020 = vunpack.c.0.s8 %v1019
        %v1021 = vlaneseq
        %v1022 = vshrl.u32 %v1021, 7
        %v1023 = vsub.s32 %v1020, %v1022
        %v1024 = vrot.slane %v1016, %v1023
        %v1026 = vunpack.c.l.s4 1934713408
        %v1027 = vunpack.c.0.s8 %v1026
        %v1028 = vlaneseq
        %v1029 = vshrl.u32 %v1028, 7
        %v1030 = vsub.s32 %v1027, %v1029
        %v1031 = vrot.slane %v1017, %v1030
        %v1032 = vcombine.high %v1024, 0
        %v1033 = vcombine.high %v1031, 0
        %v1036 = vpack.i.b16 %v1024, %v990
        %v1038 = vshrl.u32 %v990, 16
        %v1039 = vshrl.u32 %v1024, 16
        %v1040 = vpack.i.b16 %v1039, %v1038
        %v1044 = vpack.i.b16 %v1032, %v998
        %v1046 = vshrl.u32 %v998, 16
        %v1047 = vshrl.u32 %v1032, 16
        %v1048 = vpack.i.b16 %v1047, %v1046
        %v1052 = vpack.i.b16 %v1031, %v997
        %v1054 = vshrl.u32 %v997, 16
        %v1055 = vshrl.u32 %v1031, 16
        %v1056 = vpack.i.b16 %v1055, %v1054
        %v1060 = vpack.i.b16 %v1033, %v999
        %v1062 = vshrl.u32 %v999, 16
        %v1063 = vshrl.u32 %v1033, 16
        %v1064 = vpack.i.b16 %v1063, %v1062
        %v1066 = vcombine.low %v1036, %v1052
        %v1068 = vunpack.c.l.s4 1983009808
        %v1069 = vunpack.c.0.s8 %v1068
        %v1070 = vlaneseq
        %v1071 = vshrl.u32 %v1070, 7
        %v1072 = vsub.s32 %v1069, %v1071
        %v1073 = vrot.slane %v1066, %v1072
        %v1074 = vcombine.low %v1044, %v1060
        %v1076 = vunpack.c.l.s4 1983009808
        %v1077 = vunpack.c.0.s8 %v1076
        %v1078 = vlaneseq
        %v1079 = vshrl.u32 %v1078, 7
        %v1080 = vsub.s32 %v1077, %v1079
        %v1081 = vrot.slane %v1074, %v1080
        %v1082 = vcombine.low %v1073, %v1081
        %v1084 = vunpack.c.l.s4 1934713408
        %v1085 = vunpack.c.0.s8 %v1084
        %v1086 = vlaneseq
        %v1087 = vshrl.u32 %v1086, 7
        %v1088 = vsub.s32 %v1085, %v1087
        %v1089 = vrot.slane %v1082, %v1088
        %v1090 = vcombine.high %v1089, 0
        %v1091 = vcombine.low %v1040, %v1056
        %v1093 = vunpack.c.l.s4 1983009808
        %v1094 = vunpack.c.0.s8 %v1093
        %v1095 = vlaneseq
        %v1096 = vshrl.u32 %v1095, 7
        %v1097 = vsub.s32 %v1094, %v1096
        %v1098 = vrot.slane %v1091, %v1097
        %v1099 = vcombine.low %v1048, %v1064
        %v1101 = vunpack.c.l.s4 1983009808
        %v1102 = vunpack.c.0.s8 %v1101
        %v1103 = vlaneseq
        %v1104 = vshrl.u32 %v1103, 7
        %v1105 = vsub.s32 %v1102, %v1104
        %v1106 = vrot.slane %v1099, %v1105
        %v1107 = vcombine.low %v1098, %v1106
        %v1109 = vunpack.c.l.s4 1934713408
        %v1110 = vunpack.c.0.s8 %v1109
        %v1111 = vlaneseq
        %v1112 = vshrl.u32 %v1111, 7
        %v1113 = vsub.s32 %v1110, %v1112
        %v1114 = vrot.slane %v1107, %v1113
        %v1115 = vcombine.high %v1114, 0
        %v1118 = vpack.i.b16 %v1114, %v1089
        %v1119 = vshrl.u32 %v1089, 16
        %v1120 = vshrl.u32 %v1114, 16
        %v1121 = vpack.i.b16 %v1120, %v1119
        %v1124 = vpack.i.b16 %v1115, %v1090
        %v1125 = vshrl.u32 %v1090, 16
        %v1126 = vshrl.u32 %v1115, 16
        %v1127 = vpack.i.b16 %v1126, %v1125
        %vm1128 = vcmask 64512
        %v1130 = vsel %vm1128, %v780, 0
        %v1133 = vsel %vm1128, %v949, 0
        %1135 = vmatprep.subr.bf16.mxu0 0
        %1136 = vmatpush1.bf16.xpose.msra.mxu0 %v1133
        %1137 = vmatprep.subr.bf16.mxu0 0
        %1138 = vmatpush1.bf16.xpose.msra.mxu0 0
        %1139 = vmatprep.subr.bf16.mxu0 0
        %1140 = vmatpush1.bf16.xpose.msra.mxu0 0
        %1141 = vmatprep.subr.bf16.mxu0 0
        %1142 = vmatpush1.bf16.xpose.msra.mxu0 0
        %1143 = vmatprep.subr.bf16.mxu0 0
        %1144 = vmatpush1.bf16.xpose.msra.mxu0 0
        %1145 = vmatprep.subr.bf16.mxu0 0
        %1146 = vmatpush1.bf16.xpose.msra.mxu0 0
        %1147 = vmatprep.subr.bf16.mxu0 0
        %1148 = vmatpush1.bf16.xpose.msra.mxu0 0
        %1149 = vmatprep.subr.bf16.mxu0 0
        %1150 = vmatpush1.bf16.xpose.msra.mxu0 0
        %1151 = vmatprep.subr.bf16.mxu0 0
        %1152 = vmatpush1.bf16.xpose.msra.mxu0 0
        %1153 = vmatprep.subr.bf16.mxu0 0
        %1154 = vmatpush1.bf16.xpose.msra.mxu0 0
        %1155 = vmatprep.subr.bf16.mxu0 0
        %1156 = vmatpush1.bf16.xpose.msra.mxu0 0
        %1157 = vmatprep.subr.bf16.mxu0 0
        %1158 = vmatpush1.bf16.xpose.msra.mxu0 0
        %1159 = vmatprep.subr.bf16.mxu0 0
        %1160 = vmatpush1.bf16.xpose.msra.mxu0 0
        %1161 = vmatprep.subr.bf16.mxu0 0
        %1162 = vmatpush1.bf16.xpose.msra.mxu0 0
        %1163 = vmatprep.subr.bf16.mxu0 0
        %1164 = vmatpush1.bf16.xpose.msra.mxu0 0
        %1165 = vmatprep.subr.bf16.mxu0 0
        %1166 = vmatpush1.bf16.xpose.msra.mxu0 0
        %1167 = vmatprep.mubr.bf16.mxu0 0
        %1168 = vmatmul.mubr.bf16.gmra.mrb[0].mxu0 %v1130
        %v1169 = vpop.f32.mrb[0].mxu0
        %v1170 = vadd.f32 0.0, %v1169
        %v1171 = vpop.f32.mrb[0].mxu0
        %v1172 = vpop.f32.mrb[0].mxu0
        %v1173 = vpop.f32.mrb[0].mxu0
        %1174 = vdwg.mxu0
        %v1176 = vsel %vm1128, %v783, 0
        %v1179 = vsel %vm1128, %v952, 0
        %1181 = vmatprep.subr.bf16.mxu0 0
        %1182 = vmatpush1.bf16.xpose.msra.mxu0 %v1179
        %1183 = vmatprep.subr.bf16.mxu0 0
        %1184 = vmatpush1.bf16.xpose.msra.mxu0 0
        %1185 = vmatprep.subr.bf16.mxu0 0
        %1186 = vmatpush1.bf16.xpose.msra.mxu0 0
        %1187 = vmatprep.subr.bf16.mxu0 0
        %1188 = vmatpush1.bf16.xpose.msra.mxu0 0
        %1189 = vmatprep.subr.bf16.mxu0 0
        %1190 = vmatpush1.bf16.xpose.msra.mxu0 0
        %1191 = vmatprep.subr.bf16.mxu0 0
        %1192 = vmatpush1.bf16.xpose.msra.mxu0 0
        %1193 = vmatprep.subr.bf16.mxu0 0
        %1194 = vmatpush1.bf16.xpose.msra.mxu0 0
        %1195 = vmatprep.subr.bf16.mxu0 0
        %1196 = vmatpush1.bf16.xpose.msra.mxu0 0
        %1197 = vmatprep.subr.bf16.mxu0 0
        %1198 = vmatpush1.bf16.xpose.msra.mxu0 0
        %1199 = vmatprep.subr.bf16.mxu0 0
        %1200 = vmatpush1.bf16.xpose.msra.mxu0 0
        %1201 = vmatprep.subr.bf16.mxu0 0
        %1202 = vmatpush1.bf16.xpose.msra.mxu0 0
        %1203 = vmatprep.subr.bf16.mxu0 0
        %1204 = vmatpush1.bf16.xpose.msra.mxu0 0
        %1205 = vmatprep.subr.bf16.mxu0 0
        %1206 = vmatpush1.bf16.xpose.msra.mxu0 0
        %1207 = vmatprep.subr.bf16.mxu0 0
        %1208 = vmatpush1.bf16.xpose.msra.mxu0 0
        %1209 = vmatprep.subr.bf16.mxu0 0
        %1210 = vmatpush1.bf16.xpose.msra.mxu0 0
        %1211 = vmatprep.subr.bf16.mxu0 0
        %1212 = vmatpush1.bf16.xpose.msra.mxu0 0
        %1213 = vmatprep.mubr.bf16.mxu0 0
        %1214 = vmatmul.mubr.bf16.gmra.mrb[0].mxu0 %v1176
        %v1215 = vpop.f32.mrb[0].mxu0
        %v1216 = vadd.f32 0.0, %v1215
        %v1217 = vpop.f32.mrb[0].mxu0
        %v1218 = vpop.f32.mrb[0].mxu0
        %v1219 = vpop.f32.mrb[0].mxu0
        %1220 = vdwg.mxu0
        %v1222 = vsel %vm1128, %v786, 0
        %v1225 = vsel %vm1128, %v955, 0
        %1227 = vmatprep.subr.bf16.mxu0 0
        %1228 = vmatpush1.bf16.xpose.msra.mxu0 %v1225
        %1229 = vmatprep.subr.bf16.mxu0 0
        %1230 = vmatpush1.bf16.xpose.msra.mxu0 0
        %1231 = vmatprep.subr.bf16.mxu0 0
        %1232 = vmatpush1.bf16.xpose.msra.mxu0 0
        %1233 = vmatprep.subr.bf16.mxu0 0
        %1234 = vmatpush1.bf16.xpose.msra.mxu0 0
        %1235 = vmatprep.subr.bf16.mxu0 0
        %1236 = vmatpush1.bf16.xpose.msra.mxu0 0
        %1237 = vmatprep.subr.bf16.mxu0 0
        %1238 = vmatpush1.bf16.xpose.msra.mxu0 0
        %1239 = vmatprep.subr.bf16.mxu0 0
        %1240 = vmatpush1.bf16.xpose.msra.mxu0 0
        %1241 = vmatprep.subr.bf16.mxu0 0
        %1242 = vmatpush1.bf16.xpose.msra.mxu0 0
        %1243 = vmatprep.subr.bf16.mxu0 0
        %1244 = vmatpush1.bf16.xpose.msra.mxu0 0
        %1245 = vmatprep.subr.bf16.mxu0 0
        %1246 = vmatpush1.bf16.xpose.msra.mxu0 0
        %1247 = vmatprep.subr.bf16.mxu0 0
        %1248 = vmatpush1.bf16.xpose.msra.mxu0 0
        %1249 = vmatprep.subr.bf16.mxu0 0
        %1250 = vmatpush1.bf16.xpose.msra.mxu0 0
        %1251 = vmatprep.subr.bf16.mxu0 0
        %1252 = vmatpush1.bf16.xpose.msra.mxu0 0
        %1253 = vmatprep.subr.bf16.mxu0 0
        %1254 = vmatpush1.bf16.xpose.msra.mxu0 0
        %1255 = vmatprep.subr.bf16.mxu0 0
        %1256 = vmatpush1.bf16.xpose.msra.mxu0 0
        %1257 = vmatprep.subr.bf16.mxu0 0
        %1258 = vmatpush1.bf16.xpose.msra.mxu0 0
        %1259 = vmatprep.mubr.bf16.mxu0 0
        %1260 = vmatmul.mubr.bf16.gmra.mrb[0].mxu0 %v1222
        %v1261 = vpop.f32.mrb[0].mxu0
        %v1262 = vadd.f32 0.0, %v1261
        %v1263 = vpop.f32.mrb[0].mxu0
        %v1264 = vpop.f32.mrb[0].mxu0
        %v1265 = vpop.f32.mrb[0].mxu0
        %1266 = vdwg.mxu0
        %v1268 = vsel %vm1128, %v789, 0
        %v1271 = vsel %vm1128, %v958, 0
        %1273 = vmatprep.subr.bf16.mxu0 0
        %1274 = vmatpush1.bf16.xpose.msra.mxu0 %v1271
        %1275 = vmatprep.subr.bf16.mxu0 0
        %1276 = vmatpush1.bf16.xpose.msra.mxu0 0
        %1277 = vmatprep.subr.bf16.mxu0 0
        %1278 = vmatpush1.bf16.xpose.msra.mxu0 0
        %1279 = vmatprep.subr.bf16.mxu0 0
        %1280 = vmatpush1.bf16.xpose.msra.mxu0 0
        %1281 = vmatprep.subr.bf16.mxu0 0
        %1282 = vmatpush1.bf16.xpose.msra.mxu0 0
        %1283 = vmatprep.subr.bf16.mxu0 0
        %1284 = vmatpush1.bf16.xpose.msra.mxu0 0
        %1285 = vmatprep.subr.bf16.mxu0 0
        %1286 = vmatpush1.bf16.xpose.msra.mxu0 0
        %1287 = vmatprep.subr.bf16.mxu0 0
        %1288 = vmatpush1.bf16.xpose.msra.mxu0 0
        %1289 = vmatprep.subr.bf16.mxu0 0
        %1290 = vmatpush1.bf16.xpose.msra.mxu0 0
        %1291 = vmatprep.subr.bf16.mxu0 0
        %1292 = vmatpush1.bf16.xpose.msra.mxu0 0
        %1293 = vmatprep.subr.bf16.mxu0 0
        %1294 = vmatpush1.bf16.xpose.msra.mxu0 0
        %1295 = vmatprep.subr.bf16.mxu0 0
        %1296 = vmatpush1.bf16.xpose.msra.mxu0 0
        %1297 = vmatprep.subr.bf16.mxu0 0
        %1298 = vmatpush1.bf16.xpose.msra.mxu0 0
        %1299 = vmatprep.subr.bf16.mxu0 0
        %1300 = vmatpush1.bf16.xpose.msra.mxu0 0
        %1301 = vmatprep.subr.bf16.mxu0 0
        %1302 = vmatpush1.bf16.xpose.msra.mxu0 0
        %1303 = vmatprep.subr.bf16.mxu0 0
        %1304 = vmatpush1.bf16.xpose.msra.mxu0 0
        %1305 = vmatprep.mubr.bf16.mxu0 0
        %1306 = vmatmul.mubr.bf16.gmra.mrb[0].mxu0 %v1268
        %v1307 = vpop.f32.mrb[0].mxu0
        %v1308 = vadd.f32 0.0, %v1307
        %v1309 = vpop.f32.mrb[0].mxu0
        %v1310 = vpop.f32.mrb[0].mxu0
        %v1311 = vpop.f32.mrb[0].mxu0
        %1312 = vdwg.mxu0
        %v1313 = vsel %vm1128, %v1170, -inf
        %1314 = vmax.xlane.f32.xlu0 %v1313
        %v1315 = vpop.xlane.xlu0 %1314
        %v1316 = vsel %vm1128, %v1216, -inf
        %1317 = vmax.xlane.f32.xlu0 %v1316
        %v1318 = vpop.xlane.xlu0 %1317
        %v1319 = vsel %vm1128, %v1262, -inf
        %1320 = vmax.xlane.f32.xlu0 %v1319
        %v1321 = vpop.xlane.xlu0 %1320
        %v1322 = vsel %vm1128, %v1308, -inf
        %1323 = vmax.xlane.f32.xlu0 %v1322
        %v1324 = vpop.xlane.xlu0 %1323
        %v1325 = vsub.f32 %v1170, %v1315
        %v1326 = vsub.f32 %v1216, %v1318
        %v1327 = vsub.f32 %v1262, %v1321
        %v1328 = vsub.f32 %v1308, %v1324
        %v1329 = vmul.f32 %v1325, 1.442695
        %v1330 = vpow.pop %v1329
        %v1331 = vmul.f32 %v1326, 1.442695
        %v1332 = vpow.pop %v1331
        %v1333 = vmul.f32 %v1327, 1.442695
        %v1334 = vpow.pop %v1333
        %v1335 = vmul.f32 %v1328, 1.442695
        %v1336 = vpow.pop %v1335
        %v1337 = vsel %vm1128, %v1330, 0.0
        %1338 = vadd.xlane.f32.xlu0 %v1337
        %v1339 = vpop.xlane.xlu0 %1338
        %v1340 = vsel %vm1128, %v1332, 0.0
        %1341 = vadd.xlane.f32.xlu0 %v1340
        %v1342 = vpop.xlane.xlu0 %1341
        %v1343 = vsel %vm1128, %v1334, 0.0
        %1344 = vadd.xlane.f32.xlu0 %v1343
        %v1345 = vpop.xlane.xlu0 %1344
        %v1346 = vsel %vm1128, %v1336, 0.0
        %1347 = vadd.xlane.f32.xlu0 %v1346
        %v1348 = vpop.xlane.xlu0 %1347
        %v1349 = vpack.c.bf16 %v1330, %v1330
        %v1350 = vpack.c.bf16 %v1332, %v1332
        %v1351 = vpack.c.bf16 %v1334, %v1334
        %v1352 = vpack.c.bf16 %v1336, %v1336
        %v1354 = vsel %vm1128, %v1349, 0
        %vm1356 = vcmask 1043456
        %v1358 = vsel %vm1356, %v1118, 0
        %1360 = vmatprep.subr.bf16.mxu0 0
        %1361 = vmatpush1.bf16.msra.mxu0 %v1358
        %1362 = vmatprep.subr.bf16.mxu0 0
        %1363 = vmatpush1.bf16.msra.mxu0 0
        %1364 = vmatprep.subr.bf16.mxu0 0
        %1365 = vmatpush1.bf16.msra.mxu0 0
        %1366 = vmatprep.subr.bf16.mxu0 0
        %1367 = vmatpush1.bf16.msra.mxu0 0
        %1368 = vmatprep.subr.bf16.mxu0 0
        %1369 = vmatpush1.bf16.msra.mxu0 0
        %1370 = vmatprep.subr.bf16.mxu0 0
        %1371 = vmatpush1.bf16.msra.mxu0 0
        %1372 = vmatprep.subr.bf16.mxu0 0
        %1373 = vmatpush1.bf16.msra.mxu0 0
        %1374 = vmatprep.subr.bf16.mxu0 0
        %1375 = vmatpush1.bf16.msra.mxu0 0
        %1376 = vmatprep.subr.bf16.mxu0 0
        %1377 = vmatpush1.bf16.msra.mxu0 0
        %1378 = vmatprep.subr.bf16.mxu0 0
        %1379 = vmatpush1.bf16.msra.mxu0 0
        %1380 = vmatprep.subr.bf16.mxu0 0
        %1381 = vmatpush1.bf16.msra.mxu0 0
        %1382 = vmatprep.subr.bf16.mxu0 0
        %1383 = vmatpush1.bf16.msra.mxu0 0
        %1384 = vmatprep.subr.bf16.mxu0 0
        %1385 = vmatpush1.bf16.msra.mxu0 0
        %1386 = vmatprep.subr.bf16.mxu0 0
        %1387 = vmatpush1.bf16.msra.mxu0 0
        %1388 = vmatprep.subr.bf16.mxu0 0
        %1389 = vmatpush1.bf16.msra.mxu0 0
        %1390 = vmatprep.subr.bf16.mxu0 0
        %1391 = vmatpush1.bf16.msra.mxu0 0
        %1392 = vmatprep.mubr.bf16.mxu0 0
        %1393 = vmatmul.mubr.bf16.gmra.mrb[0].mxu0 %v1354
        %v1394 = vpop.f32.mrb[0].mxu0
        %v1395 = vadd.f32 0.0, %v1394
        %v1396 = vpop.f32.mrb[0].mxu0
        %v1397 = vpop.f32.mrb[0].mxu0
        %v1398 = vpop.f32.mrb[0].mxu0
        %1399 = vdwg.mxu0
        %v1401 = vsel %vm1128, %v1350, 0
        %v1404 = vsel %vm1356, %v1121, 0
        %1406 = vmatprep.subr.bf16.mxu0 0
        %1407 = vmatpush1.bf16.msra.mxu0 %v1404
        %1408 = vmatprep.subr.bf16.mxu0 0
        %1409 = vmatpush1.bf16.msra.mxu0 0
        %1410 = vmatprep.subr.bf16.mxu0 0
        %1411 = vmatpush1.bf16.msra.mxu0 0
        %1412 = vmatprep.subr.bf16.mxu0 0
        %1413 = vmatpush1.bf16.msra.mxu0 0
        %1414 = vmatprep.subr.bf16.mxu0 0
        %1415 = vmatpush1.bf16.msra.mxu0 0
        %1416 = vmatprep.subr.bf16.mxu0 0
        %1417 = vmatpush1.bf16.msra.mxu0 0
        %1418 = vmatprep.subr.bf16.mxu0 0
        %1419 = vmatpush1.bf16.msra.mxu0 0
        %1420 = vmatprep.subr.bf16.mxu0 0
        %1421 = vmatpush1.bf16.msra.mxu0 0
        %1422 = vmatprep.subr.bf16.mxu0 0
        %1423 = vmatpush1.bf16.msra.mxu0 0
        %1424 = vmatprep.subr.bf16.mxu0 0
        %1425 = vmatpush1.bf16.msra.mxu0 0
        %1426 = vmatprep.subr.bf16.mxu0 0
        %1427 = vmatpush1.bf16.msra.mxu0 0
        %1428 = vmatprep.subr.bf16.mxu0 0
        %1429 = vmatpush1.bf16.msra.mxu0 0
        %1430 = vmatprep.subr.bf16.mxu0 0
        %1431 = vmatpush1.bf16.msra.mxu0 0
        %1432 = vmatprep.subr.bf16.mxu0 0
        %1433 = vmatpush1.bf16.msra.mxu0 0
        %1434 = vmatprep.subr.bf16.mxu0 0
        %1435 = vmatpush1.bf16.msra.mxu0 0
        %1436 = vmatprep.subr.bf16.mxu0 0
        %1437 = vmatpush1.bf16.msra.mxu0 0
        %1438 = vmatprep.mubr.bf16.mxu0 0
        %1439 = vmatmul.mubr.bf16.gmra.mrb[0].mxu0 %v1401
        %v1440 = vpop.f32.mrb[0].mxu0
        %v1441 = vadd.f32 0.0, %v1440
        %v1442 = vpop.f32.mrb[0].mxu0
        %v1443 = vpop.f32.mrb[0].mxu0
        %v1444 = vpop.f32.mrb[0].mxu0
        %1445 = vdwg.mxu0
        %v1447 = vsel %vm1128, %v1351, 0
        %v1450 = vsel %vm1356, %v1124, 0
        %1452 = vmatprep.subr.bf16.mxu0 0
        %1453 = vmatpush1.bf16.msra.mxu0 %v1450
        %1454 = vmatprep.subr.bf16.mxu0 0
        %1455 = vmatpush1.bf16.msra.mxu0 0
        %1456 = vmatprep.subr.bf16.mxu0 0
        %1457 = vmatpush1.bf16.msra.mxu0 0
        %1458 = vmatprep.subr.bf16.mxu0 0
        %1459 = vmatpush1.bf16.msra.mxu0 0
        %1460 = vmatprep.subr.bf16.mxu0 0
        %1461 = vmatpush1.bf16.msra.mxu0 0
        %1462 = vmatprep.subr.bf16.mxu0 0
        %1463 = vmatpush1.bf16.msra.mxu0 0
        %1464 = vmatprep.subr.bf16.mxu0 0
        %1465 = vmatpush1.bf16.msra.mxu0 0
        %1466 = vmatprep.subr.bf16.mxu0 0
        %1467 = vmatpush1.bf16.msra.mxu0 0
        %1468 = vmatprep.subr.bf16.mxu0 0
        %1469 = vmatpush1.bf16.msra.mxu0 0
        %1470 = vmatprep.subr.bf16.mxu0 0
        %1471 = vmatpush1.bf16.msra.mxu0 0
        %1472 = vmatprep.subr.bf16.mxu0 0
        %1473 = vmatpush1.bf16.msra.mxu0 0
        %1474 = vmatprep.subr.bf16.mxu0 0
        %1475 = vmatpush1.bf16.msra.mxu0 0
        %1476 = vmatprep.subr.bf16.mxu0 0
        %1477 = vmatpush1.bf16.msra.mxu0 0
        %1478 = vmatprep.subr.bf16.mxu0 0
        %1479 = vmatpush1.bf16.msra.mxu0 0
        %1480 = vmatprep.subr.bf16.mxu0 0
        %1481 = vmatpush1.bf16.msra.mxu0 0
        %1482 = vmatprep.subr.bf16.mxu0 0
        %1483 = vmatpush1.bf16.msra.mxu0 0
        %1484 = vmatprep.mubr.bf16.mxu0 0
        %1485 = vmatmul.mubr.bf16.gmra.mrb[0].mxu0 %v1447
        %v1486 = vpop.f32.mrb[0].mxu0
        %v1487 = vadd.f32 0.0, %v1486
        %v1488 = vpop.f32.mrb[0].mxu0
        %v1489 = vpop.f32.mrb[0].mxu0
        %v1490 = vpop.f32.mrb[0].mxu0
        %1491 = vdwg.mxu0
        %v1493 = vsel %vm1128, %v1352, 0
        %v1496 = vsel %vm1356, %v1127, 0
        %1498 = vmatprep.subr.bf16.mxu0 0
        %1499 = vmatpush1.bf16.msra.mxu0 %v1496
        %1500 = vmatprep.subr.bf16.mxu0 0
        %1501 = vmatpush1.bf16.msra.mxu0 0
        %1502 = vmatprep.subr.bf16.mxu0 0
        %1503 = vmatpush1.bf16.msra.mxu0 0
        %1504 = vmatprep.subr.bf16.mxu0 0
        %1505 = vmatpush1.bf16.msra.mxu0 0
        %1506 = vmatprep.subr.bf16.mxu0 0
        %1507 = vmatpush1.bf16.msra.mxu0 0
        %1508 = vmatprep.subr.bf16.mxu0 0
        %1509 = vmatpush1.bf16.msra.mxu0 0
        %1510 = vmatprep.subr.bf16.mxu0 0
        %1511 = vmatpush1.bf16.msra.mxu0 0
        %1512 = vmatprep.subr.bf16.mxu0 0
        %1513 = vmatpush1.bf16.msra.mxu0 0
        %1514 = vmatprep.subr.bf16.mxu0 0
        %1515 = vmatpush1.bf16.msra.mxu0 0
        %1516 = vmatprep.subr.bf16.mxu0 0
        %1517 = vmatpush1.bf16.msra.mxu0 0
        %1518 = vmatprep.subr.bf16.mxu0 0
        %1519 = vmatpush1.bf16.msra.mxu0 0
        %1520 = vmatprep.subr.bf16.mxu0 0
        %1521 = vmatpush1.bf16.msra.mxu0 0
        %1522 = vmatprep.subr.bf16.mxu0 0
        %1523 = vmatpush1.bf16.msra.mxu0 0
        %1524 = vmatprep.subr.bf16.mxu0 0
        %1525 = vmatpush1.bf16.msra.mxu0 0
        %1526 = vmatprep.subr.bf16.mxu0 0
        %1527 = vmatpush1.bf16.msra.mxu0 0
        %1528 = vmatprep.subr.bf16.mxu0 0
        %1529 = vmatpush1.bf16.msra.mxu0 0
        %1530 = vmatprep.mubr.bf16.mxu0 0
        %1531 = vmatmul.mubr.bf16.gmra.mrb[0].mxu0 %v1493
        %v1532 = vpop.f32.mrb[0].mxu0
        %v1533 = vadd.f32 0.0, %v1532
        %v1534 = vpop.f32.mrb[0].mxu0
        %v1535 = vpop.f32.mrb[0].mxu0
        %v1536 = vpop.f32.mrb[0].mxu0
        %1537 = vdwg.mxu0
        %v1538 = vrcp.pop %v1339
        %v1539 = vrcp.pop %v1342
        %v1540 = vrcp.pop %v1345
        %v1541 = vrcp.pop %v1348
        %v1542 = vmul.f32 %v1395, %v1538
        %v1543 = vmul.f32 %v1441, %v1539
        %v1544 = vmul.f32 %v1487, %v1540
        %v1545 = vmul.f32 %v1533, %v1541
        %v1546 = vpack.c.bf16 %v1542, %v1542
        %v1548 = vunpack.c.l.s4 1983009808
        %v1549 = vunpack.c.0.s8 %v1548
        %v1550 = vlaneseq
        %v1551 = vshrl.u32 %v1550, 7
        %v1552 = vsub.s32 %v1549, %v1551
        %v1553 = vrot.slane %v1546, %v1552
        %v1554 = vpack.c.bf16 %v1544, %v1544
        %v1556 = vunpack.c.l.s4 1983009808
        %v1557 = vunpack.c.0.s8 %v1556
        %v1558 = vlaneseq
        %v1559 = vshrl.u32 %v1558, 7
        %v1560 = vsub.s32 %v1557, %v1559
        %v1561 = vrot.slane %v1554, %v1560
        %v1562 = vcombine.low %v1553, %v1561
        %v1563 = vcombine.high %v1553, %v1561
        %v1565 = vunpack.c.l.s4 1934713408
        %v1566 = vunpack.c.0.s8 %v1565
        %v1567 = vlaneseq
        %v1568 = vshrl.u32 %v1567, 7
        %v1569 = vsub.s32 %v1566, %v1568
        %v1570 = vrot.slane %v1562, %v1569
        %v1572 = vunpack.c.l.s4 1934713408
        %v1573 = vunpack.c.0.s8 %v1572
        %v1574 = vlaneseq
        %v1575 = vshrl.u32 %v1574, 7
        %v1576 = vsub.s32 %v1573, %v1575
        %v1577 = vrot.slane %v1563, %v1576
        %v1578 = vcombine.high %v1570, 0
        %v1579 = vcombine.high %v1577, 0
        %v1580 = vpack.c.bf16 %v1543, %v1543
        %v1582 = vunpack.c.l.s4 1983009808
        %v1583 = vunpack.c.0.s8 %v1582
        %v1584 = vlaneseq
        %v1585 = vshrl.u32 %v1584, 7
        %v1586 = vsub.s32 %v1583, %v1585
        %v1587 = vrot.slane %v1580, %v1586
        %v1588 = vpack.c.bf16 %v1545, %v1545
        %v1590 = vunpack.c.l.s4 1983009808
        %v1591 = vunpack.c.0.s8 %v1590
        %v1592 = vlaneseq
        %v1593 = vshrl.u32 %v1592, 7
        %v1594 = vsub.s32 %v1591, %v1593
        %v1595 = vrot.slane %v1588, %v1594
        %v1596 = vcombine.low %v1587, %v1595
        %v1597 = vcombine.high %v1587, %v1595
        %v1599 = vunpack.c.l.s4 1934713408
        %v1600 = vunpack.c.0.s8 %v1599
        %v1601 = vlaneseq
        %v1602 = vshrl.u32 %v1601, 7
        %v1603 = vsub.s32 %v1600, %v1602
        %v1604 = vrot.slane %v1596, %v1603
        %v1606 = vunpack.c.l.s4 1934713408
        %v1607 = vunpack.c.0.s8 %v1606
        %v1608 = vlaneseq
        %v1609 = vshrl.u32 %v1608, 7
        %v1610 = vsub.s32 %v1607, %v1609
        %v1611 = vrot.slane %v1597, %v1610
        %v1612 = vcombine.high %v1604, 0
        %v1613 = vcombine.high %v1611, 0
        %v1616 = vpack.i.b16 %v1604, %v1570
        %v1618 = vshrl.u32 %v1570, 16
        %v1619 = vshrl.u32 %v1604, 16
        %v1620 = vpack.i.b16 %v1619, %v1618
        %v1624 = vpack.i.b16 %v1612, %v1578
        %v1626 = vshrl.u32 %v1578, 16
        %v1627 = vshrl.u32 %v1612, 16
        %v1628 = vpack.i.b16 %v1627, %v1626
        %v1632 = vpack.i.b16 %v1611, %v1577
        %v1634 = vshrl.u32 %v1577, 16
        %v1635 = vshrl.u32 %v1611, 16
        %v1636 = vpack.i.b16 %v1635, %v1634
        %v1640 = vpack.i.b16 %v1613, %v1579
        %v1642 = vshrl.u32 %v1579, 16
        %v1643 = vshrl.u32 %v1613, 16
        %v1644 = vpack.i.b16 %v1643, %v1642
        %v1646 = vcombine.low %v1616, %v1632
        %v1648 = vunpack.c.l.s4 1983009808
        %v1649 = vunpack.c.0.s8 %v1648
        %v1650 = vlaneseq
        %v1651 = vshrl.u32 %v1650, 7
        %v1652 = vsub.s32 %v1649, %v1651
        %v1653 = vrot.slane %v1646, %v1652
        %v1654 = vcombine.low %v1624, %v1640
        %v1656 = vunpack.c.l.s4 1983009808
        %v1657 = vunpack.c.0.s8 %v1656
        %v1658 = vlaneseq
        %v1659 = vshrl.u32 %v1658, 7
        %v1660 = vsub.s32 %v1657, %v1659
        %v1661 = vrot.slane %v1654, %v1660
        %v1662 = vcombine.low %v1653, %v1661
        %v1664 = vunpack.c.l.s4 1934713408
        %v1665 = vunpack.c.0.s8 %v1664
        %v1666 = vlaneseq
        %v1667 = vshrl.u32 %v1666, 7
        %v1668 = vsub.s32 %v1665, %v1667
        %v1669 = vrot.slane %v1662, %v1668
        %v1670 = vcombine.high %v1669, 0
        %v1671 = vcombine.low %v1620, %v1636
        %v1673 = vunpack.c.l.s4 1983009808
        %v1674 = vunpack.c.0.s8 %v1673
        %v1675 = vlaneseq
        %v1676 = vshrl.u32 %v1675, 7
        %v1677 = vsub.s32 %v1674, %v1676
        %v1678 = vrot.slane %v1671, %v1677
        %v1679 = vcombine.low %v1628, %v1644
        %v1681 = vunpack.c.l.s4 1983009808
        %v1682 = vunpack.c.0.s8 %v1681
        %v1683 = vlaneseq
        %v1684 = vshrl.u32 %v1683, 7
        %v1685 = vsub.s32 %v1682, %v1684
        %v1686 = vrot.slane %v1679, %v1685
        %v1687 = vcombine.low %v1678, %v1686
        %v1689 = vunpack.c.l.s4 1934713408
        %v1690 = vunpack.c.0.s8 %v1689
        %v1691 = vlaneseq
        %v1692 = vshrl.u32 %v1691, 7
        %v1693 = vsub.s32 %v1690, %v1692
        %v1694 = vrot.slane %v1687, %v1693
        %v1695 = vcombine.high %v1694, 0
        %v1698 = vpack.i.b16 %v1694, %v1669
        %v1699 = vshrl.u32 %v1669, 16
        %v1700 = vshrl.u32 %v1694, 16
        %v1701 = vpack.i.b16 %v1700, %v1699
        %v1704 = vpack.i.b16 %v1695, %v1670
        %v1705 = vshrl.u32 %v1670, 16
        %v1706 = vshrl.u32 %v1695, 16
        %v1707 = vpack.i.b16 %v1706, %v1705
        %1708 = vrot.lane.b32.xlu0 %v1701, 8
        %v1709 = vpop.permute.xlu0 %1708
        %1710 = vrot.lane.b32.xlu0 %v1704, 16
        %v1711 = vpop.permute.xlu0 %1710
        %1712 = vrot.lane.b32.xlu0 %v1707, 24
        %v1713 = vpop.permute.xlu0 %1712
        %v1716 = vsel %vm1128, %v1698, %v1709
        %vm1717 = vcmask 130048
        %v1719 = vsel %vm1717, %v1716, %v1711
        %vm1720 = vcmask 195584
        %v1722 = vsel %vm1720, %v1719, %v1713
        %s1723 = smul.addr %s430, 4
        %s1724 = scalar_lea.vmem %s5, %s1723
        %v1725 = vld [vmem:[%s1724] sm:$0xf]
        %v1726 = vld [vmem:[%s1724 + $0x4] sm:$0xf]
        %v1727 = vld [vmem:[%s1724 + $0x8] sm:$0xf]
        %v1728 = vld [vmem:[%s1724 + $0xc] sm:$0xf]
        %v1729 = vlaneseq
        %v1730 = vshrl.u32 %v1729, 7
        %v1731 = vsub.s32 3, %v1730
        %v1732 = vrot.slane %v427, %v1731
        %v1737 = vunpack.c.l.b16 %v1725
        %v1738 = vunpack.c.l.b16 %v1726
        %v1739 = vunpack.c.l.b16 %v1727
        %v1740 = vunpack.c.l.b16 %v1728
        %v1741 = vpack.c.b16 %v1738, %v1737
        %v1742 = vpack.c.b16 %v1740, %v1739
        %v1745 = vsel %vm453, %v1722, 0
        %1747 = vmatprep.subr.bf16.mxu0 0
        %1748 = vmatpush1.bf16.msra.mxu0 %v1741
        %1749 = vmatprep.subr.bf16.mxu0 0
        %1750 = vmatpush1.bf16.msra.mxu0 %v1742
        %1751 = vmatprep.subr.bf16.mxu0 0
        %1752 = vmatpush1.bf16.msra.mxu0 0
        %1753 = vmatprep.subr.bf16.mxu0 0
        %1754 = vmatpush1.bf16.msra.mxu0 0
        %1755 = vmatprep.subr.bf16.mxu0 0
        %1756 = vmatpush1.bf16.msra.mxu0 0
        %1757 = vmatprep.subr.bf16.mxu0 0
        %1758 = vmatpush1.bf16.msra.mxu0 0
        %1759 = vmatprep.subr.bf16.mxu0 0
        %1760 = vmatpush1.bf16.msra.mxu0 0
        %1761 = vmatprep.subr.bf16.mxu0 0
        %1762 = vmatpush1.bf16.msra.mxu0 0
        %1763 = vmatprep.subr.bf16.mxu0 0
        %1764 = vmatpush1.bf16.msra.mxu0 0
        %1765 = vmatprep.subr.bf16.mxu0 0
        %1766 = vmatpush1.bf16.msra.mxu0 0
        %1767 = vmatprep.subr.bf16.mxu0 0
        %1768 = vmatpush1.bf16.msra.mxu0 0
        %1769 = vmatprep.subr.bf16.mxu0 0
        %1770 = vmatpush1.bf16.msra.mxu0 0
        %1771 = vmatprep.subr.bf16.mxu0 0
        %1772 = vmatpush1.bf16.msra.mxu0 0
        %1773 = vmatprep.subr.bf16.mxu0 0
        %1774 = vmatpush1.bf16.msra.mxu0 0
        %1775 = vmatprep.subr.bf16.mxu0 0
        %1776 = vmatpush1.bf16.msra.mxu0 0
        %1777 = vmatprep.subr.bf16.mxu0 0
        %1778 = vmatpush1.bf16.msra.mxu0 0
        %1779 = vmatprep.mubr.bf16.mxu0 0
        %1780 = vmatmul.mubr.bf16.gmra.mrb[0].mxu0 %v1745
        %v1781 = vpop.f32.mrb[0].mxu0
        %v1782 = vadd.f32 %v1732, %v1781
        %v1783 = vpop.f32.mrb[0].mxu0
        %v1784 = vpop.f32.mrb[0].mxu0
        %v1785 = vpop.f32.mrb[0].mxu0
        %1786 = vdwg.mxu0
        %v1787 = vadd.f32 %v1782, %v424
        %v1788 = vsel %vm453, %v1787, 0.0
        %1789 = vadd.xlane.f32.xlu0 %v1788
        %v1790 = vpop.xlane.xlu0 %1789
        %v1791 = vrcp.pop 32.0
        %v1792 = vmul.f32 %v1790, %v1791
        %v1793 = vmul.f32 %v1787, %v1787
        %v1794 = vsel %vm453, %v1793, 0.0
        %1795 = vadd.xlane.f32.xlu0 %v1794
        %v1796 = vpop.xlane.xlu0 %1795
        %v1797 = vmul.f32 %v1796, %v1791
        %v1798 = vmul.f32 %v1792, %v1792
        %v1799 = vsub.f32 %v1797, %v1798
        %v1800 = vmax.f32 %v1799, 0.0
        %v1801 = vadd.f32 %v1800, 1e-05
        %v1802 = vrsqrt.pop %v1801
        %v1803 = vsub.f32 %v1787, %v1792
        %v1804 = vlaneseq
        %v1805 = vshrl.u32 %v1804, 7
        %v1806 = vsub.s32 4, %v1805
        %v1807 = vrot.slane %v427, %v1806
        %v1808 = vmul.f32 %v1802, %v1807
        %v1809 = vmul.f32 %v1803, %v1808
        %v1810 = vlaneseq
        %v1811 = vshrl.u32 %v1810, 7
        %v1812 = vsub.s32 5, %v1811
        %v1813 = vrot.slane %v427, %v1812
        %v1814 = vadd.f32 %v1809, %v1813
        %v1815 = vpack.c.bf16 %v1814, %v1814
        %s1816 = smul.addr %s430, 4
        %s1817 = scalar_lea.vmem [#allocation8], %s1816
        %v1818 = vld [vmem:[%s1817] sm:$0xf]
        %v1819 = vld [vmem:[%s1817 + $0x4] sm:$0xf]
        %v1820 = vld [vmem:[%s1817 + $0x8] sm:$0xf]
        %v1821 = vld [vmem:[%s1817 + $0xc] sm:$0xf]
        %v1822 = vlaneseq
        %v1823 = vshrl.u32 %v1822, 7
        %v1824 = vsub.s32 6, %v1823
        %v1825 = vrot.slane %v427, %v1824
        %v1830 = vunpack.c.l.b16 %v1818
        %v1831 = vunpack.c.l.b16 %v1819
        %v1832 = vunpack.c.l.b16 %v1820
        %v1833 = vunpack.c.l.b16 %v1821
        %v1834 = vpack.c.b16 %v1831, %v1830
        %v1835 = vpack.c.b16 %v1833, %v1832
        %v1839 = vsel %vm453, %v1815, 0
        %1841 = vmatprep.subr.bf16.mxu0 0
        %1842 = vmatpush1.bf16.msra.mxu0 %v1834
        %1843 = vmatprep.subr.bf16.mxu0 0
        %1844 = vmatpush1.bf16.msra.mxu0 %v1835
        %1845 = vmatprep.subr.bf16.mxu0 0
        %1846 = vmatpush1.bf16.msra.mxu0 0
        %1847 = vmatprep.subr.bf16.mxu0 0
        %1848 = vmatpush1.bf16.msra.mxu0 0
        %1849 = vmatprep.subr.bf16.mxu0 0
        %1850 = vmatpush1.bf16.msra.mxu0 0
        %1851 = vmatprep.subr.bf16.mxu0 0
        %1852 = vmatpush1.bf16.msra.mxu0 0
        %1853 = vmatprep.subr.bf16.mxu0 0
        %1854 = vmatpush1.bf16.msra.mxu0 0
        %1855 = vmatprep.subr.bf16.mxu0 0
        %1856 = vmatpush1.bf16.msra.mxu0 0
        %1857 = vmatprep.subr.bf16.mxu0 0
        %1858 = vmatpush1.bf16.msra.mxu0 0
        %1859 = vmatprep.subr.bf16.mxu0 0
        %1860 = vmatpush1.bf16.msra.mxu0 0
        %1861 = vmatprep.subr.bf16.mxu0 0
        %1862 = vmatpush1.bf16.msra.mxu0 0
        %1863 = vmatprep.subr.bf16.mxu0 0
        %1864 = vmatpush1.bf16.msra.mxu0 0
        %1865 = vmatprep.subr.bf16.mxu0 0
        %1866 = vmatpush1.bf16.msra.mxu0 0
        %1867 = vmatprep.subr.bf16.mxu0 0
        %1868 = vmatpush1.bf16.msra.mxu0 0
        %1869 = vmatprep.subr.bf16.mxu0 0
        %1870 = vmatpush1.bf16.msra.mxu0 0
        %1871 = vmatprep.subr.bf16.mxu0 0
        %1872 = vmatpush1.bf16.msra.mxu0 0
        %1873 = vmatprep.mubr.bf16.mxu0 0
        %1874 = vmatmul.mubr.bf16.gmra.mrb[0].mxu0 %v1839
        %v1875 = vpop.f32.mrb[0].mxu0
        %v1876 = vadd.f32 %v1825, %v1875
        %v1877 = vpop.f32.mrb[0].mxu0
        %v1878 = vpop.f32.mrb[0].mxu0
        %v1879 = vpop.f32.mrb[0].mxu0
        %1880 = vdwg.mxu0
        %v1881 = vmax.f32 %v1876, 0.0
        %v1882 = vpack.c.bf16 %v1881, %v1881
        %s1883 = smul.u32 %s33, 8
        %s1884 = smul.addr %s1883, 4
        %s1885 = scalar_lea.vmem %s7, %s1884
        %v1886 = vld [vmem:[%s1885] sm:$0xf]
        %v1887 = vld [vmem:[%s1885 + $0x4] sm:$0xf]
        %v1888 = vld [vmem:[%s1885 + $0x8] sm:$0xf]
        %v1889 = vld [vmem:[%s1885 + $0xc] sm:$0xf]
        %v1890 = vld [vmem:[%s1885 + $0x10] sm:$0xf]
        %v1891 = vld [vmem:[%s1885 + $0x14] sm:$0xf]
        %v1892 = vld [vmem:[%s1885 + $0x18] sm:$0xf]
        %v1893 = vld [vmem:[%s1885 + $0x1c] sm:$0xf]
        %v1894 = vlaneseq
        %v1895 = vshrl.u32 %v1894, 7
        %v1896 = vsub.s32 7, %v1895
        %v1897 = vrot.slane %v427, %v1896
        %v1906 = vunpack.c.l.b16 %v1886
        %v1907 = vunpack.c.l.b16 %v1887
        %v1908 = vunpack.c.l.b16 %v1888
        %v1909 = vunpack.c.l.b16 %v1889
        %v1910 = vunpack.c.l.b16 %v1890
        %v1911 = vunpack.c.l.b16 %v1891
        %v1912 = vunpack.c.l.b16 %v1892
        %v1913 = vunpack.c.l.b16 %v1893
        %v1914 = vpack.c.b16 %v1907, %v1906
        %v1915 = vpack.c.b16 %v1909, %v1908
        %v1916 = vpack.c.b16 %v1911, %v1910
        %v1917 = vpack.c.b16 %v1913, %v1912
        %vm1922 = vcmask 523264
        %v1924 = vsel %vm1922, %v1882, 0
        %1926 = vmatprep.subr.bf16.mxu0 0
        %1927 = vmatpush1.bf16.msra.mxu0 %v1914
        %1928 = vmatprep.subr.bf16.mxu0 0
        %1929 = vmatpush1.bf16.msra.mxu0 %v1915
        %1930 = vmatprep.subr.bf16.mxu0 0
        %1931 = vmatpush1.bf16.msra.mxu0 %v1916
        %1932 = vmatprep.subr.bf16.mxu0 0
        %1933 = vmatpush1.bf16.msra.mxu0 %v1917
        %1934 = vmatprep.subr.bf16.mxu0 0
        %1935 = vmatpush1.bf16.msra.mxu0 0
        %1936 = vmatprep.subr.bf16.mxu0 0
        %1937 = vmatpush1.bf16.msra.mxu0 0
        %1938 = vmatprep.subr.bf16.mxu0 0
        %1939 = vmatpush1.bf16.msra.mxu0 0
        %1940 = vmatprep.subr.bf16.mxu0 0
        %1941 = vmatpush1.bf16.msra.mxu0 0
        %1942 = vmatprep.subr.bf16.mxu0 0
        %1943 = vmatpush1.bf16.msra.mxu0 0
        %1944 = vmatprep.subr.bf16.mxu0 0
        %1945 = vmatpush1.bf16.msra.mxu0 0
        %1946 = vmatprep.subr.bf16.mxu0 0
        %1947 = vmatpush1.bf16.msra.mxu0 0
        %1948 = vmatprep.subr.bf16.mxu0 0
        %1949 = vmatpush1.bf16.msra.mxu0 0
        %1950 = vmatprep.subr.bf16.mxu0 0
        %1951 = vmatpush1.bf16.msra.mxu0 0
        %1952 = vmatprep.subr.bf16.mxu0 0
        %1953 = vmatpush1.bf16.msra.mxu0 0
        %1954 = vmatprep.subr.bf16.mxu0 0
        %1955 = vmatpush1.bf16.msra.mxu0 0
        %1956 = vmatprep.subr.bf16.mxu0 0
        %1957 = vmatpush1.bf16.msra.mxu0 0
        %1958 = vmatprep.mubr.bf16.mxu0 0
        %1959 = vmatmul.mubr.bf16.gmra.mrb[0].mxu0 %v1924
        %v1960 = vpop.f32.mrb[0].mxu0
        %v1961 = vadd.f32 %v1897, %v1960
        %v1962 = vpop.f32.mrb[0].mxu0
        %v1963 = vpop.f32.mrb[0].mxu0
        %v1964 = vpop.f32.mrb[0].mxu0
        %1965 = vdwg.mxu0
        %v1966 = vadd.f32 %v1961, %v1814
        %v1967 = vsel %vm453, %v1966, 0.0
        %1968 = vadd.xlane.f32.xlu0 %v1967
        %v1969 = vpop.xlane.xlu0 %1968
        %v1970 = vmul.f32 %v1969, %v1791
        %v1971 = vmul.f32 %v1966, %v1966
        %v1972 = vsel %vm453, %v1971, 0.0
        %1973 = vadd.xlane.f32.xlu0 %v1972
        %v1974 = vpop.xlane.xlu0 %1973
        %v1975 = vmul.f32 %v1974, %v1791
        %v1976 = vmul.f32 %v1970, %v1970
        %v1977 = vsub.f32 %v1975, %v1976
        %v1978 = vmax.f32 %v1977, 0.0
        %v1979 = vadd.f32 %v1978, 1e-05
        %v1980 = vrsqrt.pop %v1979
        %v1981 = vsub.f32 %v1966, %v1970
        %v1982 = vlaneseq
        %v1983 = vshrl.u32 %v1982, 7
        %v1984 = vsub.s32 0, %v1983
        %v1985 = vrot.slane %v428, %v1984
        %v1986 = vmul.f32 %v1980, %v1985
        %v1987 = vmul.f32 %v1981, %v1986
        %v1988 = vlaneseq
        %v1989 = vshrl.u32 %v1988, 7
        %v1990 = vsub.s32 1, %v1989
        %v1991 = vrot.slane %v428, %v1990
        %v1992 = vadd.f32 %v1987, %v1991
        %p1993 = scmp.ne.s32.totalorder %s33, 1
        // Predicated region
        $region77: #{tpu_custom_call.1} parent=59 // pred_check
          %p1994 = pneg %p1993
        $region78: #{tpu_custom_call.1} parent=59 // pred_check_branch
          %1996 = sbr.rel (%p1994) target = $region80
        $region79: #{tpu_custom_call.1} parent=59 // pred_region
          %1997 = vst.msk [vmem:[#allocation2] sm:$0xff] %vm453, %v1992
        $region80: #{tpu_custom_call.1} parent=59 // pred_fallthru
          _
        %p1998 = scmp.eq.s32.totalorder %s33, 1
        // Predicated region
        $region81: #{tpu_custom_call.1} parent=59 // pred_check
          %p1999 = pneg %p1998
        $region82: #{tpu_custom_call.1} parent=59 // pred_check_branch
          %2001 = sbr.rel (%p1999) target = $region84
        $region83: #{tpu_custom_call.1} parent=59 // pred_region
          %v2002 = vld [vmem:[%s9] sm:$0x1]
          %v2003 = vld [vmem:[%s9 + $0x1] sm:$0x1]
          %v2004 = vsel %vm453, %v1992, 0.0
          %2005 = vadd.xlane.f32.xlu0 %v2004
          %v2006 = vpop.xlane.xlu0 %2005
          %v2007 = vmul.f32 %v2006, %v1791
          %v2008 = vmul.f32 %v1992, %v1992
          %v2009 = vsel %vm453, %v2008, 0.0
          %2010 = vadd.xlane.f32.xlu0 %v2009
          %v2011 = vpop.xlane.xlu0 %2010
          %v2012 = vmul.f32 %v2011, %v1791
          %v2013 = vmul.f32 %v2007, %v2007
          %v2014 = vsub.f32 %v2012, %v2013
          %v2015 = vmax.f32 %v2014, 0.0
          %v2016 = vadd.f32 %v2015, 1e-06
          %v2017 = vrsqrt.pop %v2016
          %v2018 = vsub.f32 %v1992, %v2007
          %v2019 = vlaneseq
          %v2020 = vshrl.u32 %v2019, 7
          %v2021 = vsub.s32 0, %v2020
          %v2022 = vrot.slane %v2002, %v2021
          %v2023 = vmul.f32 %v2017, %v2022
          %v2024 = vmul.f32 %v2018, %v2023
          %v2025 = vlaneseq
          %v2026 = vshrl.u32 %v2025, 7
          %v2027 = vsub.s32 0, %v2026
          %v2028 = vrot.slane %v2003, %v2027
          %v2029 = vadd.f32 %v2024, %v2028
          %2030 = vst.msk [vmem:[%s413] sm:$0xff] %vm453, %v2029
        $region84: #{tpu_custom_call.1} parent=59 // pred_fallthru
          _
        %s2031 = sand.u32 %s263, 1
        %s2032 = scalar_lea.sflag [#allocation5], %s2031
        %s2033 = sand.u32 %s263, 1
        %s2034 = smul.addr %s2033, 8
        %s2035 = scalar_lea.vmem [#allocation9], %s2034
        // Predicated region
        $region85: #{tpu_custom_call.1} parent=59 // pred_check
          %p2036 = pneg %p273
        $region86: #{tpu_custom_call.1} parent=59 // pred_check_branch
          %2038 = sbr.rel (%p2036) target = $region88
        $region87: #{tpu_custom_call.1} parent=59 // pred_region
          %s2040 = ssub.s32 128, 128
          %2041 = vsyncadd %s2032, %s2040
          %s2042 = smul.addr %s32, 128
          %s2043 = scalar_lea.hbm %s10, %s2042
          %s2045 = sshll.u32 %s2035, 4
          %s2046 = int_to_ptr.vmem [resolvable:$true] %s2045
          %2048 = dma.vmem_to_hbm [thread:$0]  %s2046, 128, %s2043, %s2032
        $region88: #{tpu_custom_call.1} parent=59 // pred_fallthru
          _
      $region60: #{tpu_custom_call.1} parent=5 // pred_fallthru
        _
      %p2049 = scmp.le.s32.totalorder 2, %s23
      // Predicated region
      $region89: #{tpu_custom_call.1} parent=5 // pred_check
        %p2050 = pneg %p2049
      $region90: #{tpu_custom_call.1} parent=5 // pred_check_branch
        %2052 = sbr.rel (%p2050) target = $region92
      $region91: #{tpu_custom_call.1} parent=5 // pred_region
        %s2053 = ssub.s32 %s23, 2
        // Predicated region
        $region93: #{tpu_custom_call.1} parent=91 // pred_check
          %p2054 = pneg %p279
        $region94: #{tpu_custom_call.1} parent=91 // pred_check_branch
          %2056 = sbr.rel (%p2054) target = $region96
        $region95: #{tpu_custom_call.1} parent=91 // pred_region
          %s2057 = sand.u32 %s264, 1
          %s2058 = scalar_lea.sflag [#allocation5], %s2057
          %s2059 = sand.u32 %s264, 1
          %s2060 = smul.addr %s2059, 8
          %s2061 = scalar_lea.vmem [#allocation9], %s2060
          %2062 = dma.done %s2058, 128
        $region96: #{tpu_custom_call.1} parent=91 // pred_fallthru
          _
      $region92: #{tpu_custom_call.1} parent=5 // pred_fallthru
        _
    $region6: #{tpu_custom_call.1} parent=1 // loop_footer
      %s27 = sadd.s32 1, %s23
    $region7: #{tpu_custom_call.1} parent=1 // loop_footer_branch
      %22 = sbr.rel target = $region3
    $region8: #{tpu_custom_call.1} parent=1 // loop_exit
      _
    %2063 = vsyncpa [#allocation4], 1
    %s2064 = scalar_lea.sflag [#allocation4], 1
    %2065 = vsyncpa %s2064, 1
    %2066 = vsyncpa [#allocation7], 1
    %2067 = vsyncpa [#allocation5], 1
    %s2068 = scalar_lea.sflag [#allocation5], 1
    %2069 = vsyncpa %s2068, 1

</llo_original>
